<compile_context>
chip_gen: v7x
topology: tpu7x:2x2x1
jax: 0.10.0
libtpu: 0.0.40
codegen_flags: <defaults>
</compile_context>

<pallas_src>
import jax
import jax.numpy as jnp
from jax import lax
from jax.experimental import pallas as pl
from jax.experimental.pallas import tpu as pltpu

_NT_DIMS = (((1,), (1,)), ((), ()))  # contract last dim of both operands (A @ B^T, no XLU transpose)


def _clap_kernel(inv_temp_ref,                       # SMEM (1,)  f32  1/temperature
                 a_ref, t_ref, wa_ref, wt_ref,       # VMEM bf16 inputs
                 ae_ref, te_ref, loss_ref,           # VMEM outputs
                 t16_ref, s_col_ref, acc_ref):       # VMEM scratch
    eps = 1e-12
    k = pl.program_id(0)
    nk = pl.num_programs(0)
    tb = a_ref.shape[0]          # audio rows per grid step
    b = t16_ref.shape[0]         # full batch

    inv_temp = inv_temp_ref[0]

    # ---- step 0: project + normalize text once (resident); init accumulators ----
    @pl.when(k == 0)
    def _init():
        t_proj = jnp.dot(t_ref[...], wt_ref[...], preferred_element_type=jnp.float32)
        t_emb = t_proj * lax.rsqrt(jnp.sum(t_proj * t_proj, axis=-1, keepdims=True) + eps)
        te_ref[...] = t_emb.astype(te_ref.dtype)            # embeddings go out
        t16_ref[...] = t_emb.astype(jnp.bfloat16)            # bf16 copy feeds the logits MXU
        s_col_ref[...] = jnp.zeros_like(s_col_ref)
        acc_ref[...] = jnp.zeros_like(acc_ref)

    # ---- audio projection head for this row tile (bf16 MXU, f32 accumulate) ----
    a_proj = jnp.dot(a_ref[...], wa_ref[...], preferred_element_type=jnp.float32)
    a_emb = a_proj * lax.rsqrt(jnp.sum(a_proj * a_proj, axis=-1, keepdims=True) + eps)
    ae_ref[...] = a_emb.astype(ae_ref.dtype)                  # un-scaled embeddings go out
    a16 = a_emb.astype(jnp.bfloat16)                          # bf16 operand for the quadratic matmul

    # ---- cosine logits (TB,B): bf16 operands, f32 MXU accumulation, NT form ----
    cos = lax.dot_general(a16, t16_ref[...], _NT_DIMS,
                          preferred_element_type=jnp.float32)

    # |cos| <= 1 (up to rounding) -> constant-shift softmax: one exp pass shared
    # by both loss directions, no max reduces, no online rescale.
    p = jnp.exp(inv_temp * (cos - 1.0))                       # == exp(logit - inv_temp)
    lse_row = inv_temp + jnp.log(jnp.sum(p, axis=-1, keepdims=True))    # (TB,1) lane reduce
    s_col_ref[...] += jnp.sum(p, axis=0, keepdims=True)                 # (1,B) sublane reduce

    # matched-pair (diagonal) logits via paired row product (no eye mask, no gather)
    row0 = pl.multiple_of(k * tb, tb)
    t_rows = t16_ref[pl.ds(row0, tb), :]                                # (TB,E) bf16
    diag = inv_temp * jnp.sum(a16.astype(jnp.float32) * t_rows.astype(jnp.float32),
                              axis=-1, keepdims=True)                   # (TB,1)

    # Defer all cross-lane scalar reduces to the final step: vector adds only.
    #   loss_total = sum(lse_row) - 2*sum(diag) + sum(lse_col)
    acc_ref[...] += lse_row - 2.0 * diag

    # ---- finalize on last row tile ----
    @pl.when(k == nk - 1)
    def _finalize():
        lse_col = inv_temp + jnp.log(s_col_ref[...])                    # (1,B)
        total = (jnp.sum(acc_ref[...], keepdims=True)
                 + jnp.sum(lse_col, keepdims=True))                     # (1,1)
        loss_ref[...] = (0.5 / b) * total


def clap_forward(audio_feats, text_feats, w_audio, w_text, temperature,
                 *, row_tile=None, embed_dtype=jnp.float32):
    """Project -> L2-normalize -> symmetric contrastive loss.

    Returns (audio_embed [B,E], text_embed [B,E], loss scalar f32).
    """
    b, da = audio_feats.shape
    bt, dt = text_feats.shape
    assert b == bt, "audio/text batch must match (paired contrastive batch)"
    e = w_audio.shape[1]
    assert w_text.shape[0] == dt and w_text.shape[1] == e

    if row_tile is None:
        # Cap at 256: keeps (TB,B) intermediates + residents inside v7x's 64 MiB VMEM
        # while staying MXU-aligned on all generations.
        row_tile = min(b, 256)
    assert b % row_tile == 0, "batch must be divisible by row_tile"
    assert row_tile % 16 == 0, "row_tile must be a multiple of 16 (bf16 sublane tile)"
    n_tiles = b // row_tile

    inv_temp_f = 1.0 / float(temperature)
    # Constant-shift LSE relies on |logit| <= 1/temperature staying exp-safe in f32.
    # TODO(synk): a learnable logit scale that can exceed ~40 needs the online-max path.
    assert inv_temp_f <= 40.0, "constant-shift softmax unsafe for 1/temperature > 40"

    # bf16 operands for every matmul (halves HBM->VMEM bytes; f32 accumulation).
    a16 = audio_feats.astype(jnp.bfloat16)
    t16 = text_feats.astype(jnp.bfloat16)
    wa16 = w_audio.astype(jnp.bfloat16)
    wt16 = w_text.astype(jnp.bfloat16)

    # Precompute 1/temperature on host; kernel only multiplies.
    inv_temp = jnp.asarray([inv_temp_f], dtype=jnp.float32)

    emb_bytes = jnp.dtype(embed_dtype).itemsize
    # Rough VMEM footprint: resident inputs + resident outputs/scratch +
    # double-buffered moving tiles + (TB,B) f32 intermediates, then headroom.
    est = (b * dt * 2 + da * e * 2 + dt * e * 2            # resident bf16 inputs
           + b * e * (2 + emb_bytes)                       # te output + bf16 scratch copy
           + 2 * row_tile * da * 2                         # audio tile (double-buffered)
           + 2 * row_tile * e * (4 + emb_bytes)            # a_proj/a_emb + ae out tile
           + 4 * b + 8 * row_tile                          # s_col + acc scratch
           + 4 * row_tile * b * 4)                         # cos / p intermediates (generous)
    vmem_limit = int(min(100 * (1 << 20), max(32 * (1 << 20), 2 * est)))

    out_shape = (
        jax.ShapeDtypeStruct((b, e), embed_dtype),   # audio embeddings
        jax.ShapeDtypeStruct((b, e), embed_dtype),   # text embeddings
        jax.ShapeDtypeStruct((1, 1), jnp.float32),   # loss
    )

    def build(single_buffer_residents):
        def resident(shape):
            # Constant-index-map blocks never change -> single-buffer them to
            # recover VMEM headroom (matters on v7x's 64 MiB / v5e's 16 MiB scoped default).
            if single_buffer_residents:
                return pl.BlockSpec(shape, lambda i: (0, 0), pipeline_mode=pl.Buffered(1))
            return pl.BlockSpec(shape, lambda i: (0, 0))

        grid_spec = pltpu.PrefetchScalarGridSpec(
            num_scalar_prefetch=0,
            grid=(n_tiles,),
            in_specs=[
                pl.BlockSpec(memory_space=pltpu.MemorySpace.SMEM),   # inv_temp (1,)
                pl.BlockSpec((row_tile, da), lambda i: (i, 0)),      # audio row tile
                resident((b, dt)),                                   # text feats (resident)
                resident((da, e)),                                   # W_audio (resident)
                resident((dt, e)),                                   # W_text (resident)
            ],
            out_specs=[
                pl.BlockSpec((row_tile, e), lambda i: (i, 0)),       # audio embeddings (tiled)
                resident((b, e)),                                    # text embeddings (resident)
                pl.BlockSpec((1, 1), lambda i: (0, 0)),              # loss
            ],
            scratch_shapes=[
                pltpu.VMEM((b, e), jnp.bfloat16),        # bf16 text embeds for the logits MXU
                pltpu.VMEM((1, b), jnp.float32),         # column sum of exp (text->audio)
                pltpu.VMEM((row_tile, 1), jnp.float32),  # running sum of (lse_row - 2*diag)
            ],
        )
        return pl.pallas_call(
            _clap_kernel,
            out_shape=out_shape,
            grid_spec=grid_spec,
            # Cross-tile accumulation makes the row-tile axis a reduction ->
            # sequential ("arbitrary"), not "parallel".
            compiler_params=pltpu.CompilerParams(
                dimension_semantics=("arbitrary",),
                vmem_limit_bytes=vmem_limit),
        )

    try:
        ae, te, loss = build(True)(inv_temp, a16, t16, wa16, wt16)
    except Exception:
        # pipeline_mode=pl.Buffered(1) unsupported on this jax/libtpu combo:
        # fall back to default double-buffering of the resident blocks.
        ae, te, loss = build(False)(inv_temp, a16, t16, wa16, wt16)
    return ae, te, loss[0, 0]


def _reference(audio_feats, text_feats, w_audio, w_text, temperature):
    """Pure-JAX reference mirroring the kernel's numerics (bf16 matmul operands,
    f32 accumulation / normalization / softmax)."""
    eps = 1e-12
    a = jnp.dot(audio_feats.astype(jnp.bfloat16), w_audio.astype(jnp.bfloat16),
                preferred_element_type=jnp.float32)
    t = jnp.dot(text_feats.astype(jnp.bfloat16), w_text.astype(jnp.bfloat16),
                preferred_element_type=jnp.float32)
    a = a * lax.rsqrt(jnp.sum(a * a, axis=-1, keepdims=True) + eps)
    t = t * lax.rsqrt(jnp.sum(t * t, axis=-1, keepdims=True) + eps)
    cos = jnp.dot(a.astype(jnp.bfloat16), t.astype(jnp.bfloat16).T,
                  preferred_element_type=jnp.float32)
    logits = cos / temperature
    n = logits.shape[0]
    labels = jnp.arange(n)
    loss_a = -jnp.mean(jax.nn.log_softmax(logits, axis=-1)[labels, labels])
    loss_t = -jnp.mean(jax.nn.log_softmax(logits.T, axis=-1)[labels, labels])
    return a, t, 0.5 * (loss_a + loss_t)


if __name__ == "__main__":
    # Small but lane/sublane-friendly demo shapes: 32 paired (audio, text)
    # feature vectors, 128-dim inputs projected into a 128-dim joint space,
    # two row tiles of 16 so the multi-step accumulation path is exercised.
    B, D_AUDIO, D_TEXT, E = 32, 128, 128, 128
    ROW_TILE = 16
    TEMPERATURE = 0.07

    key = jax.random.PRNGKey(0)
    k_a, k_t, k_wa, k_wt = jax.random.split(key, 4)

    audio_feats = jax.random.normal(k_a, (B, D_AUDIO), jnp.float32)
    text_feats = jax.random.normal(k_t, (B, D_TEXT), jnp.float32)
    # Deterministic synthetic projection heads (no checkpoint load).
    w_audio = jax.random.normal(k_wa, (D_AUDIO, E), jnp.float32) * (D_AUDIO ** -0.5)
    w_text = jax.random.normal(k_wt, (D_TEXT, E), jnp.float32) * (D_TEXT ** -0.5)

    a_emb, t_emb, loss = clap_forward(audio_feats, text_feats, w_audio, w_text,
                                      TEMPERATURE, row_tile=ROW_TILE)
    jax.block_until_ready((a_emb, t_emb, loss))

    a_r, t_r, loss_r = _reference(audio_feats, text_feats, w_audio, w_text, TEMPERATURE)
    assert jnp.allclose(a_emb.astype(jnp.float32), a_r, atol=2e-3), "audio embeddings mismatch"
    assert jnp.allclose(t_emb.astype(jnp.float32), t_r, atol=2e-3), "text embeddings mismatch"
    assert jnp.allclose(loss, loss_r, atol=2e-2), "loss mismatch"

    print("KERNEL_OK")
</pallas_src>

<mosaic_0001>
module attributes {stable_mosaic.version = 11 : i64} {
  func.func @_clap_kernel(%arg0: i32, %arg1: memref<1xf32, #tpu.memory_space<smem>>, %arg2: memref<16x128xbf16, #tpu.memory_space<vmem>>, %arg3: memref<32x128xbf16, #tpu.memory_space<vmem>>, %arg4: memref<128x128xbf16, #tpu.memory_space<vmem>>, %arg5: memref<128x128xbf16, #tpu.memory_space<vmem>>, %arg6: memref<16x128xf32, #tpu.memory_space<vmem>>, %arg7: memref<32x128xf32, #tpu.memory_space<vmem>>, %arg8: memref<1x1xf32, #tpu.memory_space<vmem>>, %arg9: memref<32x128xbf16, #tpu.memory_space<vmem>>, %arg10: memref<1x32xf32, #tpu.memory_space<vmem>>, %arg11: memref<16x1xf32, #tpu.memory_space<vmem>>) attributes {dimension_semantics = [#tpu.dimension_semantics<arbitrary>], iteration_bounds = array<i64: 2>, scalar_prefetch = 0 : i64, scratch_operands = 3 : i64, tpu.core_type = #tpu.core_type<tc>, window_params = [{transform_indices = @transform_0, window_bounds = array<i64: 1>}, {transform_indices = @transform_1, window_bounds = array<i64: 16, 128>}, {pipeline_mode = #tpu.pipeline_mode<synchronous>, transform_indices = @transform_2, window_bounds = array<i64: 32, 128>}, {pipeline_mode = #tpu.pipeline_mode<synchronous>, transform_indices = @transform_3, window_bounds = array<i64: 128, 128>}, {pipeline_mode = #tpu.pipeline_mode<synchronous>, transform_indices = @transform_4, window_bounds = array<i64: 128, 128>}, {transform_indices = @transform_5, window_bounds = array<i64: 16, 128>}, {pipeline_mode = #tpu.pipeline_mode<synchronous>, transform_indices = @transform_6, window_bounds = array<i64: 32, 128>}, {pipeline_mode = #tpu.pipeline_mode<synchronous>, transform_indices = @transform_7, window_bounds = array<i64: 1, 1>}]} {
    %c0 = arith.constant 0 : index
    %0 = memref.load %arg1[%c0] : memref<1xf32, #tpu.memory_space<smem>>
    %c0_i32 = arith.constant 0 : i32
    %1 = arith.cmpi eq, %arg0, %c0_i32 : i32
    %2 = arith.extui %1 : i1 to i32
    %c0_i32_0 = arith.constant 0 : i32
    %3 = arith.cmpi ne, %2, %c0_i32_0 : i32
    scf.if %3 {
      %c0_27 = arith.constant 0 : index
      %c0_28 = arith.constant 0 : index
      %54 = vector.load %arg3[%c0_27, %c0_28] : memref<32x128xbf16, #tpu.memory_space<vmem>>, vector<32x128xbf16>
      %c0_29 = arith.constant 0 : index
      %c0_30 = arith.constant 0 : index
      %55 = vector.load %arg5[%c0_29, %c0_30] : memref<128x128xbf16, #tpu.memory_space<vmem>>, vector<128x128xbf16>
      %cst_31 = arith.constant dense<0.000000e+00> : vector<32x128xf32>
      %56 = tpu.matmul %54, %55, %cst_31 {dimension_numbers = #tpu.dot_dimension_numbers<[1], [0], [0], [1], [0, 0, 1, 1], [], []>} : vector<32x128xbf16>, vector<128x128xbf16>, vector<32x128xf32> -> vector<32x128xf32>
      %57 = arith.mulf %56, %56 : vector<32x128xf32>
      %cst_32 = arith.constant dense<0.000000e+00> : vector<32xf32>
      %58 = vector.multi_reduction <add>, %57, %cst_32 [1] : vector<32x128xf32> to vector<32xf32>
      %59 = vector.shape_cast %58 : vector<32xf32> to vector<32x1xf32>
      %cst_33 = arith.constant 9.99999996E-13 : f32
      %60 = vector.broadcast %cst_33 : f32 to vector<32x1xf32>
      %61 = arith.addf %59, %60 : vector<32x1xf32>
      %62 = math.rsqrt %61 : vector<32x1xf32>
      %63 = vector.broadcast %62 : vector<32x1xf32> to vector<32x128xf32>
      %64 = arith.mulf %56, %63 : vector<32x128xf32>
      %c0_34 = arith.constant 0 : index
      %c0_35 = arith.constant 0 : index
      %65 = vector.load %arg7[%c0_34, %c0_35] : memref<32x128xf32, #tpu.memory_space<vmem>>, vector<32x128xf32>
      tpu.vector_store %arg7[%c0_34, %c0_35], %64 {strides = array<i32>} : memref<32x128xf32, #tpu.memory_space<vmem>>, vector<32x128xf32>,
      %66 = arith.truncf %64 : vector<32x128xf32> to vector<32x128xbf16>
      %c0_36 = arith.constant 0 : index
      %c0_37 = arith.constant 0 : index
      %67 = vector.load %arg9[%c0_36, %c0_37] : memref<32x128xbf16, #tpu.memory_space<vmem>>, vector<32x128xbf16>
      tpu.vector_store %arg9[%c0_36, %c0_37], %66 {strides = array<i32>} : memref<32x128xbf16, #tpu.memory_space<vmem>>, vector<32x128xbf16>,
      %cst_38 = arith.constant 0.000000e+00 : f32
      %68 = vector.broadcast %cst_38 : f32 to vector<1x32xf32>
      %c0_39 = arith.constant 0 : index
      %c0_40 = arith.constant 0 : index
      %69 = vector.load %arg10[%c0_39, %c0_40] : memref<1x32xf32, #tpu.memory_space<vmem>>, vector<1x32xf32>
      tpu.vector_store %arg10[%c0_39, %c0_40], %68 {strides = array<i32>} : memref<1x32xf32, #tpu.memory_space<vmem>>, vector<1x32xf32>,
      %cst_41 = arith.constant 0.000000e+00 : f32
      %70 = vector.broadcast %cst_41 : f32 to vector<16x1xf32>
      %c0_42 = arith.constant 0 : index
      %c0_43 = arith.constant 0 : index
      %71 = vector.load %arg11[%c0_42, %c0_43] : memref<16x1xf32, #tpu.memory_space<vmem>>, vector<16x1xf32>
      tpu.vector_store %arg11[%c0_42, %c0_43], %70 {strides = array<i32>} : memref<16x1xf32, #tpu.memory_space<vmem>>, vector<16x1xf32>,
    } else {
    }
    %c0_1 = arith.constant 0 : index
    %c0_2 = arith.constant 0 : index
    %4 = vector.load %arg2[%c0_1, %c0_2] : memref<16x128xbf16, #tpu.memory_space<vmem>>, vector<16x128xbf16>
    %c0_3 = arith.constant 0 : index
    %c0_4 = arith.constant 0 : index
    %5 = vector.load %arg4[%c0_3, %c0_4] : memref<128x128xbf16, #tpu.memory_space<vmem>>, vector<128x128xbf16>
    %cst = arith.constant dense<0.000000e+00> : vector<16x128xf32>
    %6 = tpu.matmul %4, %5, %cst {dimension_numbers = #tpu.dot_dimension_numbers<[1], [0], [0], [1], [0, 0, 1, 1], [], []>} : vector<16x128xbf16>, vector<128x128xbf16>, vector<16x128xf32> -> vector<16x128xf32>
    %7 = arith.mulf %6, %6 : vector<16x128xf32>
    %cst_5 = arith.constant dense<0.000000e+00> : vector<16xf32>
    %8 = vector.multi_reduction <add>, %7, %cst_5 [1] : vector<16x128xf32> to vector<16xf32>
    %9 = vector.shape_cast %8 : vector<16xf32> to vector<16x1xf32>
    %cst_6 = arith.constant 9.99999996E-13 : f32
    %10 = vector.broadcast %cst_6 : f32 to vector<16x1xf32>
    %11 = arith.addf %9, %10 : vector<16x1xf32>
    %12 = math.rsqrt %11 : vector<16x1xf32>
    %13 = vector.broadcast %12 : vector<16x1xf32> to vector<16x128xf32>
    %14 = arith.mulf %6, %13 : vector<16x128xf32>
    %c0_7 = arith.constant 0 : index
    %c0_8 = arith.constant 0 : index
    %15 = vector.load %arg6[%c0_7, %c0_8] : memref<16x128xf32, #tpu.memory_space<vmem>>, vector<16x128xf32>
    tpu.vector_store %arg6[%c0_7, %c0_8], %14 {strides = array<i32>} : memref<16x128xf32, #tpu.memory_space<vmem>>, vector<16x128xf32>,
    %16 = arith.truncf %14 : vector<16x128xf32> to vector<16x128xbf16>
    %c0_9 = arith.constant 0 : index
    %c0_10 = arith.constant 0 : index
    %17 = vector.load %arg9[%c0_9, %c0_10] : memref<32x128xbf16, #tpu.memory_space<vmem>>, vector<32x128xbf16>
    %cst_11 = arith.constant dense<0.000000e+00> : vector<16x32xf32>
    %18 = tpu.matmul %16, %17, %cst_11 {dimension_numbers = #tpu.dot_dimension_numbers<[1], [1], [0], [0], [0, 0, 1, 0], [], []>} : vector<16x128xbf16>, vector<32x128xbf16>, vector<16x32xf32> -> vector<16x32xf32>
    %cst_12 = arith.constant 1.000000e+00 : f32
    %19 = vector.broadcast %cst_12 : f32 to vector<16x32xf32>
    %20 = arith.subf %18, %19 : vector<16x32xf32>
    %21 = vector.broadcast %0 : f32 to vector<16x32xf32>
    %22 = arith.mulf %21, %20 : vector<16x32xf32>
    %23 = math.exp %22 : vector<16x32xf32>
    %cst_13 = arith.constant dense<0.000000e+00> : vector<16xf32>
    %24 = vector.multi_reduction <add>, %23, %cst_13 [1] : vector<16x32xf32> to vector<16xf32>
    %25 = vector.shape_cast %24 : vector<16xf32> to vector<16x1xf32>
    %26 = math.log %25 : vector<16x1xf32>
    %27 = vector.broadcast %0 : f32 to vector<16x1xf32>
    %28 = arith.addf %27, %26 : vector<16x1xf32>
    %c0_14 = arith.constant 0 : index
    %c0_15 = arith.constant 0 : index
    %29 = vector.load %arg10[%c0_14, %c0_15] : memref<1x32xf32, #tpu.memory_space<vmem>>, vector<1x32xf32>
    %cst_16 = arith.constant dense<0.000000e+00> : vector<32xf32>
    %30 = vector.multi_reduction <add>, %23, %cst_16 [0] : vector<16x32xf32> to vector<32xf32>
    %31 = vector.shape_cast %30 : vector<32xf32> to vector<1x32xf32>
    %32 = arith.addf %29, %31 : vector<1x32xf32>
    %c0_17 = arith.constant 0 : index
    %c0_18 = arith.constant 0 : index
    %33 = vector.load %arg10[%c0_17, %c0_18] : memref<1x32xf32, #tpu.memory_space<vmem>>, vector<1x32xf32>
    tpu.vector_store %arg10[%c0_17, %c0_18], %32 {strides = array<i32>} : memref<1x32xf32, #tpu.memory_space<vmem>>, vector<1x32xf32>,
    %c16_i32 = arith.constant 16 : i32
    %34 = arith.muli %arg0, %c16_i32 : i32
    %35 = tpu.assume_multiple %34, 16 : i32
    %36 = arith.index_cast %35 : i32 to index
    %c0_19 = arith.constant 0 : index
    %37 = vector.load %arg9[%36, %c0_19] : memref<32x128xbf16, #tpu.memory_space<vmem>>, vector<16x128xbf16>
    %38 = arith.extf %16 : vector<16x128xbf16> to vector<16x128xf32>
    %39 = arith.extf %37 : vector<16x128xbf16> to vector<16x128xf32>
    %40 = arith.mulf %38, %39 : vector<16x128xf32>
    %cst_20 = arith.constant dense<0.000000e+00> : vector<16xf32>
    %41 = vector.multi_reduction <add>, %40, %cst_20 [1] : vector<16x128xf32> to vector<16xf32>
    %42 = vector.shape_cast %41 : vector<16xf32> to vector<16x1xf32>
    %43 = vector.broadcast %0 : f32 to vector<16x1xf32>
    %44 = arith.mulf %43, %42 : vector<16x1xf32>
    %c0_21 = arith.constant 0 : index
    %c0_22 = arith.constant 0 : index
    %45 = vector.load %arg11[%c0_21, %c0_22] : memref<16x1xf32, #tpu.memory_space<vmem>>, vector<16x1xf32>
    %cst_23 = arith.constant 2.000000e+00 : f32
    %46 = vector.broadcast %cst_23 : f32 to vector<16x1xf32>
    %47 = arith.mulf %46, %44 : vector<16x1xf32>
    %48 = arith.subf %28, %47 : vector<16x1xf32>
    %49 = arith.addf %45, %48 : vector<16x1xf32>
    %c0_24 = arith.constant 0 : index
    %c0_25 = arith.constant 0 : index
    %50 = vector.load %arg11[%c0_24, %c0_25] : memref<16x1xf32, #tpu.memory_space<vmem>>, vector<16x1xf32>
    tpu.vector_store %arg11[%c0_24, %c0_25], %49 {strides = array<i32>} : memref<16x1xf32, #tpu.memory_space<vmem>>, vector<16x1xf32>,
    %c1_i32 = arith.constant 1 : i32
    %51 = arith.cmpi eq, %arg0, %c1_i32 : i32
    %52 = arith.extui %51 : i1 to i32
    %c0_i32_26 = arith.constant 0 : i32
    %53 = arith.cmpi ne, %52, %c0_i32_26 : i32
    scf.if %53 {
      %c0_27 = arith.constant 0 : index
      %c0_28 = arith.constant 0 : index
      %54 = vector.load %arg10[%c0_27, %c0_28] : memref<1x32xf32, #tpu.memory_space<vmem>>, vector<1x32xf32>
      %55 = math.log %54 : vector<1x32xf32>
      %56 = vector.broadcast %0 : f32 to vector<1x32xf32>
      %57 = arith.addf %56, %55 : vector<1x32xf32>
      %c0_29 = arith.constant 0 : index
      %c0_30 = arith.constant 0 : index
      %58 = vector.load %arg11[%c0_29, %c0_30] : memref<16x1xf32, #tpu.memory_space<vmem>>, vector<16x1xf32>
      %59 = vector.shape_cast %58 : vector<16x1xf32> to vector<1x16x1xf32>
      %cst_31 = arith.constant dense<0.000000e+00> : vector<1xf32>
      %60 = vector.multi_reduction <add>, %59, %cst_31 [1, 2] : vector<1x16x1xf32> to vector<1xf32>
      %61 = vector.shape_cast %60 : vector<1xf32> to vector<1x1x1xf32>
      %62 = vector.extract %61[0, 0, 0] : f32 from vector<1x1x1xf32>
      %63 = vector.broadcast %62 : f32 to vector<1x1xf32>
      %64 = vector.shape_cast %57 : vector<1x32xf32> to vector<1x1x32xf32>
      %cst_32 = arith.constant dense<0.000000e+00> : vector<1xf32>
      %65 = vector.multi_reduction <add>, %64, %cst_32 [1, 2] : vector<1x1x32xf32> to vector<1xf32>
      %66 = vector.shape_cast %65 : vector<1xf32> to vector<1x1x1xf32>
      %67 = vector.extract %66[0, 0, 0] : f32 from vector<1x1x1xf32>
      %68 = vector.broadcast %67 : f32 to vector<1x1xf32>
      %69 = arith.addf %63, %68 : vector<1x1xf32>
      %cst_33 = arith.constant 1.562500e-02 : f32
      %70 = vector.broadcast %cst_33 : f32 to vector<1x1xf32>
      %71 = arith.mulf %70, %69 : vector<1x1xf32>
      %c0_34 = arith.constant 0 : index
      %c0_35 = arith.constant 0 : index
      %72 = vector.load %arg8[%c0_34, %c0_35] : memref<1x1xf32, #tpu.memory_space<vmem>>, vector<1x1xf32>
      tpu.vector_store %arg8[%c0_34, %c0_35], %71 {strides = array<i32>} : memref<1x1xf32, #tpu.memory_space<vmem>>, vector<1x1xf32>,
    } else {
    }
    return
  }
  func.func @transform_0(%arg0: i32) -> i32 {
    %c0_i32 = arith.constant 0 : i32
    %c0_i32_0 = arith.constant 0 : i32
    return %c0_i32 : i32
  }
  func.func @transform_1(%arg0: i32) -> (i32, i32) {
    %c0_i32 = arith.constant 0 : i32
    %c0_i32_0 = arith.constant 0 : i32
    return %arg0, %c0_i32 : i32, i32
  }
  func.func @transform_2(%arg0: i32) -> (i32, i32) {
    %c0_i32 = arith.constant 0 : i32
    %c0_i32_0 = arith.constant 0 : i32
    %c0_i32_1 = arith.constant 0 : i32
    return %c0_i32, %c0_i32_0 : i32, i32
  }
  func.func @transform_3(%arg0: i32) -> (i32, i32) {
    %c0_i32 = arith.constant 0 : i32
    %c0_i32_0 = arith.constant 0 : i32
    %c0_i32_1 = arith.constant 0 : i32
    return %c0_i32, %c0_i32_0 : i32, i32
  }
  func.func @transform_4(%arg0: i32) -> (i32, i32) {
    %c0_i32 = arith.constant 0 : i32
    %c0_i32_0 = arith.constant 0 : i32
    %c0_i32_1 = arith.constant 0 : i32
    return %c0_i32, %c0_i32_0 : i32, i32
  }
  func.func @transform_5(%arg0: i32) -> (i32, i32) {
    %c0_i32 = arith.constant 0 : i32
    %c0_i32_0 = arith.constant 0 : i32
    return %arg0, %c0_i32 : i32, i32
  }
  func.func @transform_6(%arg0: i32) -> (i32, i32) {
    %c0_i32 = arith.constant 0 : i32
    %c0_i32_0 = arith.constant 0 : i32
    %c0_i32_1 = arith.constant 0 : i32
    return %c0_i32, %c0_i32_0 : i32, i32
  }
  func.func @transform_7(%arg0: i32) -> (i32, i32) {
    %c0_i32 = arith.constant 0 : i32
    %c0_i32_0 = arith.constant 0 : i32
    %c0_i32_1 = arith.constant 0 : i32
    return %c0_i32, %c0_i32_0 : i32, i32
  }
}

module attributes {stable_mosaic.version = 11 : i64} {
  func.func @_clap_kernel(%arg0: i32, %arg1: memref<1xf32, #tpu.memory_space<smem>>, %arg2: memref<16x128xbf16, #tpu.memory_space<vmem>>, %arg3: memref<32x128xbf16, #tpu.memory_space<vmem>>, %arg4: memref<128x128xbf16, #tpu.memory_space<vmem>>, %arg5: memref<128x128xbf16, #tpu.memory_space<vmem>>, %arg6: memref<16x128xf32, #tpu.memory_space<vmem>>, %arg7: memref<32x128xf32, #tpu.memory_space<vmem>>, %arg8: memref<1x1xf32, #tpu.memory_space<vmem>>, %arg9: memref<32x128xbf16, #tpu.memory_space<vmem>>, %arg10: memref<1x32xf32, #tpu.memory_space<vmem>>, %arg11: memref<16x1xf32, #tpu.memory_space<vmem>>) attributes {dimension_semantics = [#tpu.dimension_semantics<arbitrary>], iteration_bounds = array<i64: 2>, scalar_prefetch = 0 : i64, scratch_operands = 3 : i64, tpu.core_type = #tpu.core_type<tc>, window_params = [{transform_indices = @transform_0, window_bounds = array<i64: 1>}, {transform_indices = @transform_1, window_bounds = array<i64: 16, 128>}, {pipeline_mode = #tpu.pipeline_mode<synchronous>, transform_indices = @transform_2, window_bounds = array<i64: 32, 128>}, {pipeline_mode = #tpu.pipeline_mode<synchronous>, transform_indices = @transform_3, window_bounds = array<i64: 128, 128>}, {pipeline_mode = #tpu.pipeline_mode<synchronous>, transform_indices = @transform_4, window_bounds = array<i64: 128, 128>}, {transform_indices = @transform_5, window_bounds = array<i64: 16, 128>}, {pipeline_mode = #tpu.pipeline_mode<synchronous>, transform_indices = @transform_6, window_bounds = array<i64: 32, 128>}, {pipeline_mode = #tpu.pipeline_mode<synchronous>, transform_indices = @transform_7, window_bounds = array<i64: 1, 1>}]} {
    %c0 = arith.constant 0 : index
    %0 = memref.load %arg1[%c0] : memref<1xf32, #tpu.memory_space<smem>>
    %c0_i32 = arith.constant 0 : i32
    %1 = arith.cmpi eq, %arg0, %c0_i32 : i32
    %2 = arith.extui %1 : i1 to i32
    %c0_i32_0 = arith.constant 0 : i32
    %3 = arith.cmpi ne, %2, %c0_i32_0 : i32
    scf.if %3 {
      %c0_27 = arith.constant 0 : index
      %c0_28 = arith.constant 0 : index
      %54 = vector.load %arg3[%c0_27, %c0_28] : memref<32x128xbf16, #tpu.memory_space<vmem>>, vector<32x128xbf16>
      %c0_29 = arith.constant 0 : index
      %c0_30 = arith.constant 0 : index
      %55 = vector.load %arg5[%c0_29, %c0_30] : memref<128x128xbf16, #tpu.memory_space<vmem>>, vector<128x128xbf16>
      %cst_31 = arith.constant dense<0.000000e+00> : vector<32x128xf32>
      %56 = tpu.matmul %54, %55, %cst_31 {dimension_numbers = #tpu.dot_dimension_numbers<[1], [0], [0], [1], [0, 0, 1, 1], [], []>} : vector<32x128xbf16>, vector<128x128xbf16>, vector<32x128xf32> -> vector<32x128xf32>
      %57 = arith.mulf %56, %56 : vector<32x128xf32>
      %cst_32 = arith.constant dense<0.000000e+00> : vector<32xf32>
      %58 = vector.multi_reduction <add>, %57, %cst_32 [1] : vector<32x128xf32> to vector<32xf32>
      %59 = vector.shape_cast %58 : vector<32xf32> to vector<32x1xf32>
      %cst_33 = arith.constant 9.99999996E-13 : f32
      %60 = vector.broadcast %cst_33 : f32 to vector<32x1xf32>
      %61 = arith.addf %59, %60 : vector<32x1xf32>
      %62 = math.rsqrt %61 : vector<32x1xf32>
      %63 = vector.broadcast %62 : vector<32x1xf32> to vector<32x128xf32>
      %64 = arith.mulf %56, %63 : vector<32x128xf32>
      %c0_34 = arith.constant 0 : index
      %c0_35 = arith.constant 0 : index
      %65 = vector.load %arg7[%c0_34, %c0_35] : memref<32x128xf32, #tpu.memory_space<vmem>>, vector<32x128xf32>
      tpu.vector_store %arg7[%c0_34, %c0_35], %64 {strides = array<i32>} : memref<32x128xf32, #tpu.memory_space<vmem>>, vector<32x128xf32>,
      %66 = arith.truncf %64 : vector<32x128xf32> to vector<32x128xbf16>
      %c0_36 = arith.constant 0 : index
      %c0_37 = arith.constant 0 : index
      %67 = vector.load %arg9[%c0_36, %c0_37] : memref<32x128xbf16, #tpu.memory_space<vmem>>, vector<32x128xbf16>
      tpu.vector_store %arg9[%c0_36, %c0_37], %66 {strides = array<i32>} : memref<32x128xbf16, #tpu.memory_space<vmem>>, vector<32x128xbf16>,
      %cst_38 = arith.constant 0.000000e+00 : f32
      %68 = vector.broadcast %cst_38 : f32 to vector<1x32xf32>
      %c0_39 = arith.constant 0 : index
      %c0_40 = arith.constant 0 : index
      %69 = vector.load %arg10[%c0_39, %c0_40] : memref<1x32xf32, #tpu.memory_space<vmem>>, vector<1x32xf32>
      tpu.vector_store %arg10[%c0_39, %c0_40], %68 {strides = array<i32>} : memref<1x32xf32, #tpu.memory_space<vmem>>, vector<1x32xf32>,
      %cst_41 = arith.constant 0.000000e+00 : f32
      %70 = vector.broadcast %cst_41 : f32 to vector<16x1xf32>
      %c0_42 = arith.constant 0 : index
      %c0_43 = arith.constant 0 : index
      %71 = vector.load %arg11[%c0_42, %c0_43] : memref<16x1xf32, #tpu.memory_space<vmem>>, vector<16x1xf32>
      tpu.vector_store %arg11[%c0_42, %c0_43], %70 {strides = array<i32>} : memref<16x1xf32, #tpu.memory_space<vmem>>, vector<16x1xf32>,
    } else {
    }
    %c0_1 = arith.constant 0 : index
    %c0_2 = arith.constant 0 : index
    %4 = vector.load %arg2[%c0_1, %c0_2] : memref<16x128xbf16, #tpu.memory_space<vmem>>, vector<16x128xbf16>
    %c0_3 = arith.constant 0 : index
    %c0_4 = arith.constant 0 : index
    %5 = vector.load %arg4[%c0_3, %c0_4] : memref<128x128xbf16, #tpu.memory_space<vmem>>, vector<128x128xbf16>
    %cst = arith.constant dense<0.000000e+00> : vector<16x128xf32>
    %6 = tpu.matmul %4, %5, %cst {dimension_numbers = #tpu.dot_dimension_numbers<[1], [0], [0], [1], [0, 0, 1, 1], [], []>} : vector<16x128xbf16>, vector<128x128xbf16>, vector<16x128xf32> -> vector<16x128xf32>
    %7 = arith.mulf %6, %6 : vector<16x128xf32>
    %cst_5 = arith.constant dense<0.000000e+00> : vector<16xf32>
    %8 = vector.multi_reduction <add>, %7, %cst_5 [1] : vector<16x128xf32> to vector<16xf32>
    %9 = vector.shape_cast %8 : vector<16xf32> to vector<16x1xf32>
    %cst_6 = arith.constant 9.99999996E-13 : f32
    %10 = vector.broadcast %cst_6 : f32 to vector<16x1xf32>
    %11 = arith.addf %9, %10 : vector<16x1xf32>
    %12 = math.rsqrt %11 : vector<16x1xf32>
    %13 = vector.broadcast %12 : vector<16x1xf32> to vector<16x128xf32>
    %14 = arith.mulf %6, %13 : vector<16x128xf32>
    %c0_7 = arith.constant 0 : index
    %c0_8 = arith.constant 0 : index
    %15 = vector.load %arg6[%c0_7, %c0_8] : memref<16x128xf32, #tpu.memory_space<vmem>>, vector<16x128xf32>
    tpu.vector_store %arg6[%c0_7, %c0_8], %14 {strides = array<i32>} : memref<16x128xf32, #tpu.memory_space<vmem>>, vector<16x128xf32>,
    %16 = arith.truncf %14 : vector<16x128xf32> to vector<16x128xbf16>
    %c0_9 = arith.constant 0 : index
    %c0_10 = arith.constant 0 : index
    %17 = vector.load %arg9[%c0_9, %c0_10] : memref<32x128xbf16, #tpu.memory_space<vmem>>, vector<32x128xbf16>
    %cst_11 = arith.constant dense<0.000000e+00> : vector<16x32xf32>
    %18 = tpu.matmul %16, %17, %cst_11 {dimension_numbers = #tpu.dot_dimension_numbers<[1], [1], [0], [0], [0, 0, 1, 0], [], []>} : vector<16x128xbf16>, vector<32x128xbf16>, vector<16x32xf32> -> vector<16x32xf32>
    %cst_12 = arith.constant 1.000000e+00 : f32
    %19 = vector.broadcast %cst_12 : f32 to vector<16x32xf32>
    %20 = arith.subf %18, %19 : vector<16x32xf32>
    %21 = vector.broadcast %0 : f32 to vector<16x32xf32>
    %22 = arith.mulf %21, %20 : vector<16x32xf32>
    %23 = math.exp %22 : vector<16x32xf32>
    %cst_13 = arith.constant dense<0.000000e+00> : vector<16xf32>
    %24 = vector.multi_reduction <add>, %23, %cst_13 [1] : vector<16x32xf32> to vector<16xf32>
    %25 = vector.shape_cast %24 : vector<16xf32> to vector<16x1xf32>
    %26 = math.log %25 : vector<16x1xf32>
    %27 = vector.broadcast %0 : f32 to vector<16x1xf32>
    %28 = arith.addf %27, %26 : vector<16x1xf32>
    %c0_14 = arith.constant 0 : index
    %c0_15 = arith.constant 0 : index
    %29 = vector.load %arg10[%c0_14, %c0_15] : memref<1x32xf32, #tpu.memory_space<vmem>>, vector<1x32xf32>
    %cst_16 = arith.constant dense<0.000000e+00> : vector<32xf32>
    %30 = vector.multi_reduction <add>, %23, %cst_16 [0] : vector<16x32xf32> to vector<32xf32>
    %31 = vector.shape_cast %30 : vector<32xf32> to vector<1x32xf32>
    %32 = arith.addf %29, %31 : vector<1x32xf32>
    %c0_17 = arith.constant 0 : index
    %c0_18 = arith.constant 0 : index
    %33 = vector.load %arg10[%c0_17, %c0_18] : memref<1x32xf32, #tpu.memory_space<vmem>>, vector<1x32xf32>
    tpu.vector_store %arg10[%c0_17, %c0_18], %32 {strides = array<i32>} : memref<1x32xf32, #tpu.memory_space<vmem>>, vector<1x32xf32>,
    %c16_i32 = arith.constant 16 : i32
    %34 = arith.muli %arg0, %c16_i32 : i32
    %35 = tpu.assume_multiple %34, 16 : i32
    %36 = arith.index_cast %35 : i32 to index
    %c0_19 = arith.constant 0 : index
    %37 = vector.load %arg9[%36, %c0_19] : memref<32x128xbf16, #tpu.memory_space<vmem>>, vector<16x128xbf16>
    %38 = arith.extf %16 : vector<16x128xbf16> to vector<16x128xf32>
    %39 = arith.extf %37 : vector<16x128xbf16> to vector<16x128xf32>
    %40 = arith.mulf %38, %39 : vector<16x128xf32>
    %cst_20 = arith.constant dense<0.000000e+00> : vector<16xf32>
    %41 = vector.multi_reduction <add>, %40, %cst_20 [1] : vector<16x128xf32> to vector<16xf32>
    %42 = vector.shape_cast %41 : vector<16xf32> to vector<16x1xf32>
    %43 = vector.broadcast %0 : f32 to vector<16x1xf32>
    %44 = arith.mulf %43, %42 : vector<16x1xf32>
    %c0_21 = arith.constant 0 : index
    %c0_22 = arith.constant 0 : index
    %45 = vector.load %arg11[%c0_21, %c0_22] : memref<16x1xf32, #tpu.memory_space<vmem>>, vector<16x1xf32>
    %cst_23 = arith.constant 2.000000e+00 : f32
    %46 = vector.broadcast %cst_23 : f32 to vector<16x1xf32>
    %47 = arith.mulf %46, %44 : vector<16x1xf32>
    %48 = arith.subf %28, %47 : vector<16x1xf32>
    %49 = arith.addf %45, %48 : vector<16x1xf32>
    %c0_24 = arith.constant 0 : index
    %c0_25 = arith.constant 0 : index
    %50 = vector.load %arg11[%c0_24, %c0_25] : memref<16x1xf32, #tpu.memory_space<vmem>>, vector<16x1xf32>
    tpu.vector_store %arg11[%c0_24, %c0_25], %49 {strides = array<i32>} : memref<16x1xf32, #tpu.memory_space<vmem>>, vector<16x1xf32>,
    %c1_i32 = arith.constant 1 : i32
    %51 = arith.cmpi eq, %arg0, %c1_i32 : i32
    %52 = arith.extui %51 : i1 to i32
    %c0_i32_26 = arith.constant 0 : i32
    %53 = arith.cmpi ne, %52, %c0_i32_26 : i32
    scf.if %53 {
      %c0_27 = arith.constant 0 : index
      %c0_28 = arith.constant 0 : index
      %54 = vector.load %arg10[%c0_27, %c0_28] : memref<1x32xf32, #tpu.memory_space<vmem>>, vector<1x32xf32>
      %55 = math.log %54 : vector<1x32xf32>
      %56 = vector.broadcast %0 : f32 to vector<1x32xf32>
      %57 = arith.addf %56, %55 : vector<1x32xf32>
      %c0_29 = arith.constant 0 : index
      %c0_30 = arith.constant 0 : index
      %58 = vector.load %arg11[%c0_29, %c0_30] : memref<16x1xf32, #tpu.memory_space<vmem>>, vector<16x1xf32>
      %59 = vector.shape_cast %58 : vector<16x1xf32> to vector<1x16x1xf32>
      %cst_31 = arith.constant dense<0.000000e+00> : vector<1xf32>
      %60 = vector.multi_reduction <add>, %59, %cst_31 [1, 2] : vector<1x16x1xf32> to vector<1xf32>
      %61 = vector.shape_cast %60 : vector<1xf32> to vector<1x1x1xf32>
      %62 = vector.extract %61[0, 0, 0] : f32 from vector<1x1x1xf32>
      %63 = vector.broadcast %62 : f32 to vector<1x1xf32>
      %64 = vector.shape_cast %57 : vector<1x32xf32> to vector<1x1x32xf32>
      %cst_32 = arith.constant dense<0.000000e+00> : vector<1xf32>
      %65 = vector.multi_reduction <add>, %64, %cst_32 [1, 2] : vector<1x1x32xf32> to vector<1xf32>
      %66 = vector.shape_cast %65 : vector<1xf32> to vector<1x1x1xf32>
      %67 = vector.extract %66[0, 0, 0] : f32 from vector<1x1x1xf32>
      %68 = vector.broadcast %67 : f32 to vector<1x1xf32>
      %69 = arith.addf %63, %68 : vector<1x1xf32>
      %cst_33 = arith.constant 1.562500e-02 : f32
      %70 = vector.broadcast %cst_33 : f32 to vector<1x1xf32>
      %71 = arith.mulf %70, %69 : vector<1x1xf32>
      %c0_34 = arith.constant 0 : index
      %c0_35 = arith.constant 0 : index
      %72 = vector.load %arg8[%c0_34, %c0_35] : memref<1x1xf32, #tpu.memory_space<vmem>>, vector<1x1xf32>
      tpu.vector_store %arg8[%c0_34, %c0_35], %71 {strides = array<i32>} : memref<1x1xf32, #tpu.memory_space<vmem>>, vector<1x1xf32>,
    } else {
    }
    return
  }
  func.func @transform_0(%arg0: i32) -> i32 {
    %c0_i32 = arith.constant 0 : i32
    %c0_i32_0 = arith.constant 0 : i32
    return %c0_i32 : i32
  }
  func.func @transform_1(%arg0: i32) -> (i32, i32) {
    %c0_i32 = arith.constant 0 : i32
    %c0_i32_0 = arith.constant 0 : i32
    return %arg0, %c0_i32 : i32, i32
  }
  func.func @transform_2(%arg0: i32) -> (i32, i32) {
    %c0_i32 = arith.constant 0 : i32
    %c0_i32_0 = arith.constant 0 : i32
    %c0_i32_1 = arith.constant 0 : i32
    return %c0_i32, %c0_i32_0 : i32, i32
  }
  func.func @transform_3(%arg0: i32) -> (i32, i32) {
    %c0_i32 = arith.constant 0 : i32
    %c0_i32_0 = arith.constant 0 : i32
    %c0_i32_1 = arith.constant 0 : i32
    return %c0_i32, %c0_i32_0 : i32, i32
  }
  func.func @transform_4(%arg0: i32) -> (i32, i32) {
    %c0_i32 = arith.constant 0 : i32
    %c0_i32_0 = arith.constant 0 : i32
    %c0_i32_1 = arith.constant 0 : i32
    return %c0_i32, %c0_i32_0 : i32, i32
  }
  func.func @transform_5(%arg0: i32) -> (i32, i32) {
    %c0_i32 = arith.constant 0 : i32
    %c0_i32_0 = arith.constant 0 : i32
    return %arg0, %c0_i32 : i32, i32
  }
  func.func @transform_6(%arg0: i32) -> (i32, i32) {
    %c0_i32 = arith.constant 0 : i32
    %c0_i32_0 = arith.constant 0 : i32
    %c0_i32_1 = arith.constant 0 : i32
    return %c0_i32, %c0_i32_0 : i32, i32
  }
  func.func @transform_7(%arg0: i32) -> (i32, i32) {
    %c0_i32 = arith.constant 0 : i32
    %c0_i32_0 = arith.constant 0 : i32
    %c0_i32_1 = arith.constant 0 : i32
    return %c0_i32, %c0_i32_0 : i32, i32
  }
}

</mosaic_0001>

<llo_original>
// kernel: tpu_custom_call.1
$region0: #{tpu_custom_call.1}
  #allocation0 [shape = 'u32[]', space=smem, size = 0x4, offset = 0x4, fixed_abs, tag = 'smem constant byte address 0x4 - core index']
  #allocation1 [shape = 'u32[144,128]{1,0:T(1,128)}', space=vmem, size = 0x12000, scoped, tag = 'internal scratch']
  #allocation2 [shape = 'bf16[32,128]{1,0:T(16,128)(2,1)}', space=vmem, size = 0x2000, scoped, tag = 'scratch operand']
  #allocation3 [shape = 'f32[1,32]{1,0:T(1,128)}', space=vmem, size = 0x200, scoped, tag = 'scratch operand']
  #allocation4 [shape = 'f32[16,1]{1,0:T(8,128)}', space=vmem, size = 0x2000, scoped, tag = 'scratch operand']
  #allocation5 [shape = 'f32[1]{0:T(128)S(6)}', space=smem, size = 0x200, scoped, tag = 'scoped memory for tpu_custom_call.1']
  %s0 = inlined_call_operand.<no memory space> [shape: f32[1], index: 0, kind: input, shape index: {}]
  %s1 = inlined_call_operand.hbm [shape: bf16[32,128], index: 1, kind: input, shape index: {}]
  %s2 = inlined_call_operand.hbm [shape: bf16[32,128], index: 2, kind: input, shape index: {}]
  %s3 = inlined_call_operand.hbm [shape: bf16[128,128], index: 3, kind: input, shape index: {}]
  %s4 = inlined_call_operand.hbm [shape: bf16[128,128], index: 4, kind: input, shape index: {}]
  %s5 = inlined_call_operand.hbm [shape: f32[32,128], index: 5, kind: output, shape index: {0}]
  %s6 = inlined_call_operand.hbm [shape: f32[32,128], index: 6, kind: output, shape index: {1}]
  %s7 = inlined_call_operand.hbm [shape: f32[1,1], index: 7, kind: output, shape index: {2}]
  %8 = xla_tuple %s5, %s6, %s7
  %s9 = sld [smem:[#allocation0]]
  $region93: #{tpu_custom_call.1} parent=0
    _
  %s11 = ssub.s32 1, %s9
  %s12 = scalar_select 0, %s11, %s9
  %13 = sst [smem:[#allocation5]] %s0
  $region1: #{tpu_custom_call.1} parent=0
    #allocation6 [shape = 'u8[8192]{0}', space=vmem, size = 0x2000, scoped, tag = 'input window, operand 1']
    #allocation7 [shape = 's32[2]{0}', space=sflag, size = 0x8, scoped, tag = 'scoped memory for tpu_custom_call.1']
    #allocation8 [shape = 's32[2]{0}', space=sflag, size = 0x8, scoped, tag = 'scoped memory for tpu_custom_call.1']
    #allocation9 [shape = 'u8[8192]{0}', space=vmem, size = 0x2000, scoped, tag = 'input window, operand 2, single buffered']
    #allocation10 [shape = 's32[1]{0}', space=sflag, size = 0x4, scoped, tag = 'scoped memory for tpu_custom_call.1']
    #allocation11 [shape = 'u8[32768]{0}', space=vmem, size = 0x8000, scoped, tag = 'input window, operand 3, single buffered']
    #allocation12 [shape = 'u8[32768]{0}', space=vmem, size = 0x8000, scoped, tag = 'input window, operand 4, single buffered']
    #allocation13 [shape = 's32[1]{0}', space=sflag, size = 0x4, scoped, tag = 'scoped memory for tpu_custom_call.1']
    #allocation14 [shape = 'u8[16384]{0}', space=vmem, size = 0x4000, scoped, tag = 'output window, operand 0']
    #allocation15 [shape = 'u8[16384]{0}', space=vmem, size = 0x4000, scoped, tag = 'output window, operand 1, single buffered']
    #allocation16 [shape = 's32[1]{0}', space=sflag, size = 0x4, scoped, tag = 'scoped memory for tpu_custom_call.1']
    #allocation17 [shape = 'u8[512]{0}', space=vmem, size = 0x400, scoped, tag = 'output window, operand 2, single buffered']
    %14 = vsyncpa [#allocation7], 0
    %s15 = scalar_lea.sflag [#allocation7], 1
    %16 = vsyncpa %s15, 0
    %17 = vsyncpa [#allocation10], 0
    %18 = vsyncpa [#allocation13], 0
    %19 = vsyncpa [#allocation8], 0
    %s20 = scalar_lea.sflag [#allocation8], 1
    %21 = vsyncpa %s20, 0
    %22 = vsyncpa [#allocation16], 0
    loop: start=0, step=1, limit=4
    $region2: #{tpu_custom_call.1} parent=1 // loop_pre_header
      _
    $region3: #{tpu_custom_call.1} parent=1 // loop_header
      %s24 = sphi 0, %s28
      %p25 = scmp.ge.s32.totalorder %s24, 4
      %s32 = sphi 0, %s32
      %s34 = sphi 0, %s32
      %s35 = sphi 0, %s34
      %s49 = sphi 0, %s35
      %s55 = sphi 0, %s57
      %s58 = sphi 0, %s55
      %s59 = sphi 0, %s58
      %s75 = sphi 0, %s59
      %s79 = sphi 0, %s79
      %s81 = sphi 0, %s79
      %s82 = sphi 0, %s81
      %s96 = sphi 0, %s82
      %s100 = sphi 0, %s100
      %s102 = sphi 0, %s100
      %s103 = sphi 0, %s102
      %s117 = sphi 0, %s103
      %s121 = sphi 0, %s121
      %s123 = sphi 0, %s121
      %s124 = sphi 0, %s123
      %s138 = sphi 0, %s124
      %s144 = sphi 0, %s146
      %s147 = sphi 0, %s144
      %s148 = sphi 0, %s147
      %s164 = sphi 0, %s148
      %s168 = sphi 0, %s168
      %s170 = sphi 0, %s168
      %s171 = sphi 0, %s170
      %s185 = sphi 0, %s171
      %s189 = sphi 0, %s189
      %s191 = sphi 0, %s189
      %s192 = sphi 0, %s191
      %s206 = sphi 0, %s192
    $region4: #{tpu_custom_call.1} parent=1 // loop_header_branch
      %27 = sbr.rel (%p25) target = $region8
    $region5: #{tpu_custom_call.1} parent=1 // loop_body
      %s29 = ssub.s32 %s24, 1
      %s30 = ssub.s32 %s24, 2
      %s31 = sadd.s32 %s24, 1
      %s33 = sadd.s32 %s32, 1
      %p36 = scmp.eq.s32.totalorder %s24, 1
      %p37 = scmp.ne.s32.totalorder %s32, %s34
      %p38 = scmp.eq.s32.totalorder %s24, 0
      %p39 = por %p37, %p38
      %p40 = scmp.ne.s32.totalorder %s32, %s34
      %p41 = scmp.eq.s32.totalorder %s29, 1
      %p42 = por %p40, %p41
      %p43 = scmp.ne.s32.totalorder %s34, %s35
      %p44 = scmp.eq.s32.totalorder %s29, 0
      %p45 = por %p43, %p44
      %p46 = scmp.ne.s32.totalorder %s34, %s35
      %p47 = scmp.eq.s32.totalorder %s30, 1
      %p48 = por %p46, %p47
      %p50 = scmp.ne.s32.totalorder %s35, %s49
      %p51 = scmp.eq.s32.totalorder %s30, 0
      %p52 = por %p50, %p51
      %s53 = ssub.s32 %s24, %s31
      %p54 = scmp.eq.s32.totalorder %s53, 0
      %s56 = sadd.s32 %s55, 1
      %s57 = scalar_select %p54, %s55, %s56
      %p60 = pneg %p54
      %p61 = scmp.eq.s32.totalorder %s24, 1
      %p62 = por %p60, %p61
      %p63 = scmp.ne.s32.totalorder %s55, %s58
      %p64 = scmp.eq.s32.totalorder %s24, 0
      %p65 = por %p63, %p64
      %p66 = scmp.ne.s32.totalorder %s55, %s58
      %p67 = scmp.eq.s32.totalorder %s29, 1
      %p68 = por %p66, %p67
      %p69 = scmp.ne.s32.totalorder %s58, %s59
      %p70 = scmp.eq.s32.totalorder %s29, 0
      %p71 = por %p69, %p70
      %p72 = scmp.ne.s32.totalorder %s58, %s59
      %p73 = scmp.eq.s32.totalorder %s30, 1
      %p74 = por %p72, %p73
      %p76 = scmp.ne.s32.totalorder %s59, %s75
      %p77 = scmp.eq.s32.totalorder %s30, 0
      %p78 = por %p76, %p77
      %s80 = sadd.s32 %s79, 1
      %p83 = scmp.eq.s32.totalorder %s24, 1
      %p84 = scmp.ne.s32.totalorder %s79, %s81
      %p85 = scmp.eq.s32.totalorder %s24, 0
      %p86 = por %p84, %p85
      %p87 = scmp.ne.s32.totalorder %s79, %s81
      %p88 = scmp.eq.s32.totalorder %s29, 1
      %p89 = por %p87, %p88
      %p90 = scmp.ne.s32.totalorder %s81, %s82
      %p91 = scmp.eq.s32.totalorder %s29, 0
      %p92 = por %p90, %p91
      %p93 = scmp.ne.s32.totalorder %s81, %s82
      %p94 = scmp.eq.s32.totalorder %s30, 1
      %p95 = por %p93, %p94
      %p97 = scmp.ne.s32.totalorder %s82, %s96
      %p98 = scmp.eq.s32.totalorder %s30, 0
      %p99 = por %p97, %p98
      %s101 = sadd.s32 %s100, 1
      %p104 = scmp.eq.s32.totalorder %s24, 1
      %p105 = scmp.ne.s32.totalorder %s100, %s102
      %p106 = scmp.eq.s32.totalorder %s24, 0
      %p107 = por %p105, %p106
      %p108 = scmp.ne.s32.totalorder %s100, %s102
      %p109 = scmp.eq.s32.totalorder %s29, 1
      %p110 = por %p108, %p109
      %p111 = scmp.ne.s32.totalorder %s102, %s103
      %p112 = scmp.eq.s32.totalorder %s29, 0
      %p113 = por %p111, %p112
      %p114 = scmp.ne.s32.totalorder %s102, %s103
      %p115 = scmp.eq.s32.totalorder %s30, 1
      %p116 = por %p114, %p115
      %p118 = scmp.ne.s32.totalorder %s103, %s117
      %p119 = scmp.eq.s32.totalorder %s30, 0
      %p120 = por %p118, %p119
      %s122 = sadd.s32 %s121, 1
      %p125 = scmp.eq.s32.totalorder %s24, 1
      %p126 = scmp.ne.s32.totalorder %s121, %s123
      %p127 = scmp.eq.s32.totalorder %s24, 0
      %p128 = por %p126, %p127
      %p129 = scmp.ne.s32.totalorder %s121, %s123
      %p130 = scmp.eq.s32.totalorder %s29, 1
      %p131 = por %p129, %p130
      %p132 = scmp.ne.s32.totalorder %s123, %s124
      %p133 = scmp.eq.s32.totalorder %s29, 0
      %p134 = por %p132, %p133
      %p135 = scmp.ne.s32.totalorder %s123, %s124
      %p136 = scmp.eq.s32.totalorder %s30, 1
      %p137 = por %p135, %p136
      %p139 = scmp.ne.s32.totalorder %s124, %s138
      %p140 = scmp.eq.s32.totalorder %s30, 0
      %p141 = por %p139, %p140
      %s142 = ssub.s32 %s24, %s31
      %p143 = scmp.eq.s32.totalorder %s142, 0
      %s145 = sadd.s32 %s144, 1
      %s146 = scalar_select %p143, %s144, %s145
      %p149 = pneg %p143
      %p150 = scmp.eq.s32.totalorder %s24, 1
      %p151 = por %p149, %p150
      %p152 = scmp.ne.s32.totalorder %s144, %s147
      %p153 = scmp.eq.s32.totalorder %s24, 0
      %p154 = por %p152, %p153
      %p155 = scmp.ne.s32.totalorder %s144, %s147
      %p156 = scmp.eq.s32.totalorder %s29, 1
      %p157 = por %p155, %p156
      %p158 = scmp.ne.s32.totalorder %s147, %s148
      %p159 = scmp.eq.s32.totalorder %s29, 0
      %p160 = por %p158, %p159
      %p161 = scmp.ne.s32.totalorder %s147, %s148
      %p162 = scmp.eq.s32.totalorder %s30, 1
      %p163 = por %p161, %p162
      %p165 = scmp.ne.s32.totalorder %s148, %s164
      %p166 = scmp.eq.s32.totalorder %s30, 0
      %p167 = por %p165, %p166
      %s169 = sadd.s32 %s168, 1
      %p172 = scmp.eq.s32.totalorder %s24, 1
      %p173 = scmp.ne.s32.totalorder %s168, %s170
      %p174 = scmp.eq.s32.totalorder %s24, 0
      %p175 = por %p173, %p174
      %p176 = scmp.ne.s32.totalorder %s168, %s170
      %p177 = scmp.eq.s32.totalorder %s29, 1
      %p178 = por %p176, %p177
      %p179 = scmp.ne.s32.totalorder %s170, %s171
      %p180 = scmp.eq.s32.totalorder %s29, 0
      %p181 = por %p179, %p180
      %p182 = scmp.ne.s32.totalorder %s170, %s171
      %p183 = scmp.eq.s32.totalorder %s30, 1
      %p184 = por %p182, %p183
      %p186 = scmp.ne.s32.totalorder %s171, %s185
      %p187 = scmp.eq.s32.totalorder %s30, 0
      %p188 = por %p186, %p187
      %s190 = sadd.s32 %s189, 1
      %p193 = scmp.eq.s32.totalorder %s24, 1
      %p194 = scmp.ne.s32.totalorder %s189, %s191
      %p195 = scmp.eq.s32.totalorder %s24, 0
      %p196 = por %p194, %p195
      %p197 = scmp.ne.s32.totalorder %s189, %s191
      %p198 = scmp.eq.s32.totalorder %s29, 1
      %p199 = por %p197, %p198
      %p200 = scmp.ne.s32.totalorder %s191, %s192
      %p201 = scmp.eq.s32.totalorder %s29, 0
      %p202 = por %p200, %p201
      %p203 = scmp.ne.s32.totalorder %s191, %s192
      %p204 = scmp.eq.s32.totalorder %s30, 1
      %p205 = por %p203, %p204
      %p207 = scmp.ne.s32.totalorder %s192, %s206
      %p208 = scmp.eq.s32.totalorder %s30, 0
      %p209 = por %p207, %p208
      %p210 = scmp.le.s32.totalorder 1, %s24
      %p211 = scmp.lt.s32.totalorder %s24, 3
      %p212 = pnand %p210, %p211
      %p213 = pneg %p212
      // Predicated region
      $region9: #{tpu_custom_call.1} parent=5 // pred_check
        _
      $region10: #{tpu_custom_call.1} parent=5 // pred_check_branch
        %215 = sbr.rel (%p212) target = $region12
      $region11: #{tpu_custom_call.1} parent=5 // pred_region
        %s216 = ssub.s32 %s24, 1
        // Predicated region
        $region13: #{tpu_custom_call.1} parent=11 // pred_check
          %p217 = pneg %p45
        $region14: #{tpu_custom_call.1} parent=11 // pred_check_branch
          %219 = sbr.rel (%p217) target = $region16
        $region15: #{tpu_custom_call.1} parent=11 // pred_region
          _
        $region16: #{tpu_custom_call.1} parent=11 // pred_fallthru
          _
        // Predicated region
        $region17: #{tpu_custom_call.1} parent=11 // pred_check
          %p220 = pneg %p92
        $region18: #{tpu_custom_call.1} parent=11 // pred_check_branch
          %222 = sbr.rel (%p220) target = $region20
        $region19: #{tpu_custom_call.1} parent=11 // pred_region
          %s224 = ssub.s32 256, 256
          %225 = vsyncadd [#allocation10], %s224
          %s226 = sshll.u32 [#allocation9], 4
          %s227 = int_to_ptr.vmem [resolvable:$true] %s226
          %232 = dma.hbm_to_vmem [thread:$0]  %s2, 256, %s227, [#allocation10], 64, 64, 4
        $region20: #{tpu_custom_call.1} parent=11 // pred_fallthru
          _
        // Predicated region
        $region21: #{tpu_custom_call.1} parent=11 // pred_check
          %p233 = pneg %p113
        $region22: #{tpu_custom_call.1} parent=11 // pred_check_branch
          %235 = sbr.rel (%p233) target = $region24
        $region23: #{tpu_custom_call.1} parent=11 // pred_region
          %s237 = ssub.s32 1024, 1024
          %238 = vsyncadd [#allocation10], %s237
          %s239 = sshll.u32 [#allocation11], 4
          %s240 = int_to_ptr.vmem [resolvable:$true] %s239
          %245 = dma.hbm_to_vmem [thread:$0]  %s3, 1024, %s240, [#allocation10], 64, 64, 4
        $region24: #{tpu_custom_call.1} parent=11 // pred_fallthru
          _
        // Predicated region
        $region25: #{tpu_custom_call.1} parent=11 // pred_check
          %p246 = pneg %p134
        $region26: #{tpu_custom_call.1} parent=11 // pred_check_branch
          %248 = sbr.rel (%p246) target = $region28
        $region27: #{tpu_custom_call.1} parent=11 // pred_region
          %s250 = ssub.s32 1024, 1024
          %251 = vsyncadd [#allocation13], %s250
          %s252 = sshll.u32 [#allocation12], 4
          %s253 = int_to_ptr.vmem [resolvable:$true] %s252
          %258 = dma.hbm_to_vmem [thread:$0]  %s4, 1024, %s253, [#allocation13], 64, 64, 4
        $region28: #{tpu_custom_call.1} parent=11 // pred_fallthru
          _
      $region12: #{tpu_custom_call.1} parent=5 // pred_fallthru
        _
      %p259 = scmp.lt.s32.totalorder %s24, 2
      // Predicated region
      $region29: #{tpu_custom_call.1} parent=5 // pred_check
        %p260 = pneg %p259
      $region30: #{tpu_custom_call.1} parent=5 // pred_check_branch
        %262 = sbr.rel (%p260) target = $region32
      $region31: #{tpu_custom_call.1} parent=5 // pred_region
        // Predicated region
        $region33: #{tpu_custom_call.1} parent=31 // pred_check
          %p263 = pneg %p65
        $region34: #{tpu_custom_call.1} parent=31 // pred_check_branch
          %265 = sbr.rel (%p263) target = $region36
        $region35: #{tpu_custom_call.1} parent=31 // pred_region
          %s266 = sand.u32 %s55, 1
          %s267 = scalar_lea.sflag [#allocation7], %s266
          %s268 = sand.u32 %s55, 1
          %s269 = smul.addr %s268, 8
          %s270 = scalar_lea.vmem [#allocation6], %s269
          %s271 = smul.u32 2, %s24
          %s273 = ssub.s32 128, 128
          %274 = vsyncadd %s267, %s273
          %s275 = smul.addr %s271, 64
          %s276 = scalar_lea.hbm %s1, %s275
          %s277 = sshll.u32 %s270, 4
          %s278 = int_to_ptr.vmem [resolvable:$true] %s277
          %283 = dma.hbm_to_vmem [thread:$0]  %s276, 128, %s278, %s267, 64, 64, 4
        $region36: #{tpu_custom_call.1} parent=31 // pred_fallthru
          _
      $region32: #{tpu_custom_call.1} parent=5 // pred_fallthru
        _
      %p284 = scmp.le.s32.totalorder 1, %s24
      %p285 = scmp.lt.s32.totalorder %s24, 3
      %p286 = pnand %p284, %p285
      %p287 = pneg %p286
      // Predicated region
      $region37: #{tpu_custom_call.1} parent=5 // pred_check
        _
      $region38: #{tpu_custom_call.1} parent=5 // pred_check_branch
        %289 = sbr.rel (%p286) target = $region40
      $region39: #{tpu_custom_call.1} parent=5 // pred_region
        %s290 = ssub.s32 %s24, 1
        %s291 = sand.u32 %s58, 1
        %s292 = scalar_lea.sflag [#allocation7], %s291
        %s293 = sand.u32 %s58, 1
        %s294 = smul.addr %s293, 8
        %s295 = scalar_lea.vmem [#allocation6], %s294
        // Predicated region
        $region41: #{tpu_custom_call.1} parent=39 // pred_check
          %p296 = pneg %p71
        $region42: #{tpu_custom_call.1} parent=39 // pred_check_branch
          %298 = sbr.rel (%p296) target = $region44
        $region43: #{tpu_custom_call.1} parent=39 // pred_region
          %299 = dma.done %s292, 128
        $region44: #{tpu_custom_call.1} parent=39 // pred_fallthru
          _
        // Predicated region
        $region45: #{tpu_custom_call.1} parent=39 // pred_check
          %p300 = pneg %p92
        $region46: #{tpu_custom_call.1} parent=39 // pred_check_branch
          %302 = sbr.rel (%p300) target = $region48
        $region47: #{tpu_custom_call.1} parent=39 // pred_region
          %303 = dma.done [#allocation10], 256
        $region48: #{tpu_custom_call.1} parent=39 // pred_fallthru
          _
        // Predicated region
        $region49: #{tpu_custom_call.1} parent=39 // pred_check
          %p304 = pneg %p113
        $region50: #{tpu_custom_call.1} parent=39 // pred_check_branch
          %306 = sbr.rel (%p304) target = $region52
        $region51: #{tpu_custom_call.1} parent=39 // pred_region
          %307 = dma.done [#allocation10], 1024
        $region52: #{tpu_custom_call.1} parent=39 // pred_fallthru
          _
        // Predicated region
        $region53: #{tpu_custom_call.1} parent=39 // pred_check
          %p308 = pneg %p134
        $region54: #{tpu_custom_call.1} parent=39 // pred_check_branch
          %310 = sbr.rel (%p308) target = $region56
        $region55: #{tpu_custom_call.1} parent=39 // pred_region
          %311 = dma.done [#allocation13], 1024
        $region56: #{tpu_custom_call.1} parent=39 // pred_fallthru
          _
        %p312 = pneg %p45
        %p313 = pneg %p42
        %s314 = sand.u32 %s58, 1
        %s315 = scalar_lea.sflag [#allocation7], %s314
        %s316 = sand.u32 %s58, 1
        %s317 = smul.addr %s316, 8
        %s318 = scalar_lea.vmem [#allocation6], %s317
        %p319 = pneg %p71
        %p320 = pneg %p68
        %p321 = pneg %p92
        %p322 = pneg %p89
        %p323 = pneg %p113
        %p324 = pneg %p110
        %p325 = pneg %p134
        %p326 = pneg %p131
        %p327 = pneg %p160
        %p328 = pneg %p157
        %s329 = sand.u32 %s147, 1
        %s330 = scalar_lea.sflag [#allocation8], %s329
        %s331 = sand.u32 %s147, 1
        %s332 = smul.addr %s331, 16
        %s333 = scalar_lea.vmem [#allocation14], %s332
        %p334 = pneg %p181
        %p335 = pneg %p178
        %p336 = pneg %p202
        %p337 = pneg %p199
        %s338 = smul.u32 2, %s29
        %s339 = smul.u32 2, %s29
        %s341 = sld [smem:[#allocation5]]
        %p342 = scmp.eq.s32.totalorder %s29, 0
        // Predicated region
        $region57: #{tpu_custom_call.1} parent=39 // pred_check
          %p343 = pneg %p342
        $region58: #{tpu_custom_call.1} parent=39 // pred_check_branch
          %345 = sbr.rel (%p343) target = $region60
        $region59: #{tpu_custom_call.1} parent=39 // pred_region
          %v346 = vld [vmem:[#allocation9] sm:$0xf]
          %v347 = vld [vmem:[#allocation9 + $0x4] sm:$0xf]
          %v348 = vld [vmem:[#allocation9 + $0x8] sm:$0xf]
          %v349 = vld [vmem:[#allocation9 + $0xc] sm:$0xf]
          %v350 = vld [vmem:[#allocation12] sm:$0xf]
          %v351 = vld [vmem:[#allocation12 + $0x4] sm:$0xf]
          %v352 = vld [vmem:[#allocation12 + $0x8] sm:$0xf]
          %v353 = vld [vmem:[#allocation12 + $0xc] sm:$0xf]
          %v354 = vld [vmem:[#allocation12 + $0x10] sm:$0xf]
          %v355 = vld [vmem:[#allocation12 + $0x14] sm:$0xf]
          %v356 = vld [vmem:[#allocation12 + $0x18] sm:$0xf]
          %v357 = vld [vmem:[#allocation12 + $0x1c] sm:$0xf]
          %v358 = vld [vmem:[#allocation12 + $0x20] sm:$0xf]
          %v359 = vld [vmem:[#allocation12 + $0x24] sm:$0xf]
          %v360 = vld [vmem:[#allocation12 + $0x28] sm:$0xf]
          %v361 = vld [vmem:[#allocation12 + $0x2c] sm:$0xf]
          %v362 = vld [vmem:[#allocation12 + $0x30] sm:$0xf]
          %v363 = vld [vmem:[#allocation12 + $0x34] sm:$0xf]
          %v364 = vld [vmem:[#allocation12 + $0x38] sm:$0xf]
          %v365 = vld [vmem:[#allocation12 + $0x3c] sm:$0xf]
          %v370 = vunpack.c.l.b16 %v346
          %v371 = vunpack.c.l.b16 %v347
          %v372 = vunpack.c.l.b16 %v348
          %v373 = vunpack.c.l.b16 %v349
          %v374 = vpack.c.b16 %v371, %v370
          %v375 = vpack.c.b16 %v373, %v372
          %v394 = vunpack.c.l.b16 %v350
          %v395 = vunpack.c.l.b16 %v351
          %v396 = vunpack.c.l.b16 %v352
          %v397 = vunpack.c.l.b16 %v353
          %v398 = vunpack.c.l.b16 %v354
          %v399 = vunpack.c.l.b16 %v355
          %v400 = vunpack.c.l.b16 %v356
          %v401 = vunpack.c.l.b16 %v357
          %v402 = vunpack.c.l.b16 %v358
          %v403 = vunpack.c.l.b16 %v359
          %v404 = vunpack.c.l.b16 %v360
          %v405 = vunpack.c.l.b16 %v361
          %v406 = vunpack.c.l.b16 %v362
          %v407 = vunpack.c.l.b16 %v363
          %v408 = vunpack.c.l.b16 %v364
          %v409 = vunpack.c.l.b16 %v365
          %v410 = vpack.c.b16 %v395, %v394
          %v411 = vpack.c.b16 %v397, %v396
          %v412 = vpack.c.b16 %v399, %v398
          %v413 = vpack.c.b16 %v401, %v400
          %v414 = vpack.c.b16 %v403, %v402
          %v415 = vpack.c.b16 %v405, %v404
          %v416 = vpack.c.b16 %v407, %v406
          %v417 = vpack.c.b16 %v409, %v408
          %426 = vmatprep.subr.bf16.mxu0 0
          %427 = vmatpush1.bf16.msra.mxu0 %v410
          %428 = vmatprep.subr.bf16.mxu0 0
          %429 = vmatpush1.bf16.msra.mxu0 %v411
          %430 = vmatprep.subr.bf16.mxu0 0
          %431 = vmatpush1.bf16.msra.mxu0 %v412
          %432 = vmatprep.subr.bf16.mxu0 0
          %433 = vmatpush1.bf16.msra.mxu0 %v413
          %434 = vmatprep.subr.bf16.mxu0 0
          %435 = vmatpush1.bf16.msra.mxu0 %v414
          %436 = vmatprep.subr.bf16.mxu0 0
          %437 = vmatpush1.bf16.msra.mxu0 %v415
          %438 = vmatprep.subr.bf16.mxu0 0
          %439 = vmatpush1.bf16.msra.mxu0 %v416
          %440 = vmatprep.subr.bf16.mxu0 0
          %441 = vmatpush1.bf16.msra.mxu0 %v417
          %442 = vmatprep.subr.bf16.mxu0 0
          %443 = vmatpush1.bf16.msra.mxu0 0
          %444 = vmatprep.subr.bf16.mxu0 0
          %445 = vmatpush1.bf16.msra.mxu0 0
          %446 = vmatprep.subr.bf16.mxu0 0
          %447 = vmatpush1.bf16.msra.mxu0 0
          %448 = vmatprep.subr.bf16.mxu0 0
          %449 = vmatpush1.bf16.msra.mxu0 0
          %450 = vmatprep.subr.bf16.mxu0 0
          %451 = vmatpush1.bf16.msra.mxu0 0
          %452 = vmatprep.subr.bf16.mxu0 0
          %453 = vmatpush1.bf16.msra.mxu0 0
          %454 = vmatprep.subr.bf16.mxu0 0
          %455 = vmatpush1.bf16.msra.mxu0 0
          %456 = vmatprep.subr.bf16.mxu0 0
          %457 = vmatpush1.bf16.msra.mxu0 0
          %458 = vmatprep.mubr.bf16.mxu0 0
          %459 = vmatmul.mubr.bf16.gmra.mrb[0].mxu0 %v374
          %v460 = vpop.f32.mrb[0].mxu0
          %v461 = vadd.f32 0.0, %v460
          %v462 = vpop.f32.mrb[0].mxu0
          %v463 = vpop.f32.mrb[0].mxu0
          %v464 = vadd.f32 0.0, %v463
          %v465 = vpop.f32.mrb[0].mxu0
          %466 = vmatprep.mubr.bf16.mxu0 0
          %467 = vmatmul.mubr.bf16.gmra.mrb[0].mxu0 %v375
          %v468 = vpop.f32.mrb[0].mxu0
          %v469 = vadd.f32 0.0, %v468
          %v470 = vpop.f32.mrb[0].mxu0
          %v471 = vpop.f32.mrb[0].mxu0
          %v472 = vadd.f32 0.0, %v471
          %v473 = vpop.f32.mrb[0].mxu0
          %474 = vdwg.mxu0
          %v475 = vmul.f32 %v461, %v461
          %v476 = vmul.f32 %v464, %v464
          %v477 = vmul.f32 %v469, %v469
          %v478 = vmul.f32 %v472, %v472
          %479 = vadd.xlane.f32.xlu0 %v475
          %v480 = vpop.xlane.xlu0 %479
          %481 = vadd.xlane.f32.xlu0 %v476
          %v482 = vpop.xlane.xlu0 %481
          %483 = vadd.xlane.f32.xlu0 %v477
          %v484 = vpop.xlane.xlu0 %483
          %485 = vadd.xlane.f32.xlu0 %v478
          %v486 = vpop.xlane.xlu0 %485
          %v487 = vadd.f32 %v480, 1e-12
          %v488 = vadd.f32 %v482, 1e-12
          %v489 = vadd.f32 %v484, 1e-12
          %v490 = vadd.f32 %v486, 1e-12
          %v491 = vrsqrt.pop %v487
          %v492 = vrsqrt.pop %v488
          %v493 = vrsqrt.pop %v489
          %v494 = vrsqrt.pop %v490
          %v495 = vmul.f32 %v461, %v491
          %v496 = vmul.f32 %v464, %v492
          %v497 = vmul.f32 %v469, %v493
          %v498 = vmul.f32 %v472, %v494
          %499 = vst [vmem:[#allocation15] sm:$0xff] %v495
          %500 = vst [vmem:[#allocation15 + $0x8] sm:$0xff] %v496
          %501 = vst [vmem:[#allocation15 + $0x10] sm:$0xff] %v497
          %502 = vst [vmem:[#allocation15 + $0x18] sm:$0xff] %v498
          %v503 = vpack.c.bf16 %v496, %v495
          %v504 = vpack.c.bf16 %v498, %v497
          %505 = vst [vmem:[#allocation2] sm:$0xff] %v503
          %506 = vst [vmem:[#allocation2 + $0x8] sm:$0xff] %v504
          %vm507 = vcmask 253952
          %508 = vst.msk [vmem:[#allocation3] sm:$0x1] %vm507, 0.0
          %vm509 = vcmask 7168
          %510 = vst.msk [vmem:[#allocation4] sm:$0xff] %vm509, 0.0
          %511 = vst.msk [vmem:[#allocation4 + $0x8] sm:$0xff] %vm509, 0.0
        $region60: #{tpu_custom_call.1} parent=39 // pred_fallthru
          _
        %v512 = vld [vmem:[%s295] sm:$0xf]
        %v513 = vld [vmem:[%s295 + $0x4] sm:$0xf]
        %v514 = vld [vmem:[#allocation11] sm:$0xf]
        %v515 = vld [vmem:[#allocation11 + $0x4] sm:$0xf]
        %v516 = vld [vmem:[#allocation11 + $0x8] sm:$0xf]
        %v517 = vld [vmem:[#allocation11 + $0xc] sm:$0xf]
        %v518 = vld [vmem:[#allocation11 + $0x10] sm:$0xf]
        %v519 = vld [vmem:[#allocation11 + $0x14] sm:$0xf]
        %v520 = vld [vmem:[#allocation11 + $0x18] sm:$0xf]
        %v521 = vld [vmem:[#allocation11 + $0x1c] sm:$0xf]
        %v522 = vld [vmem:[#allocation11 + $0x20] sm:$0xf]
        %v523 = vld [vmem:[#allocation11 + $0x24] sm:$0xf]
        %v524 = vld [vmem:[#allocation11 + $0x28] sm:$0xf]
        %v525 = vld [vmem:[#allocation11 + $0x2c] sm:$0xf]
        %v526 = vld [vmem:[#allocation11 + $0x30] sm:$0xf]
        %v527 = vld [vmem:[#allocation11 + $0x34] sm:$0xf]
        %v528 = vld [vmem:[#allocation11 + $0x38] sm:$0xf]
        %v529 = vld [vmem:[#allocation11 + $0x3c] sm:$0xf]
        %v532 = vunpack.c.l.b16 %v512
        %v533 = vunpack.c.l.b16 %v513
        %v534 = vpack.c.b16 %v533, %v532
        %v552 = vunpack.c.l.b16 %v514
        %v553 = vunpack.c.l.b16 %v515
        %v554 = vunpack.c.l.b16 %v516
        %v555 = vunpack.c.l.b16 %v517
        %v556 = vunpack.c.l.b16 %v518
        %v557 = vunpack.c.l.b16 %v519
        %v558 = vunpack.c.l.b16 %v520
        %v559 = vunpack.c.l.b16 %v521
        %v560 = vunpack.c.l.b16 %v522
        %v561 = vunpack.c.l.b16 %v523
        %v562 = vunpack.c.l.b16 %v524
        %v563 = vunpack.c.l.b16 %v525
        %v564 = vunpack.c.l.b16 %v526
        %v565 = vunpack.c.l.b16 %v527
        %v566 = vunpack.c.l.b16 %v528
        %v567 = vunpack.c.l.b16 %v529
        %v568 = vpack.c.b16 %v553, %v552
        %v569 = vpack.c.b16 %v555, %v554
        %v570 = vpack.c.b16 %v557, %v556
        %v571 = vpack.c.b16 %v559, %v558
        %v572 = vpack.c.b16 %v561, %v560
        %v573 = vpack.c.b16 %v563, %v562
        %v574 = vpack.c.b16 %v565, %v564
        %v575 = vpack.c.b16 %v567, %v566
        %584 = vmatprep.subr.bf16.mxu0 0
        %585 = vmatpush1.bf16.msra.mxu0 %v568
        %586 = vmatprep.subr.bf16.mxu0 0
        %587 = vmatpush1.bf16.msra.mxu0 %v569
        %588 = vmatprep.subr.bf16.mxu0 0
        %589 = vmatpush1.bf16.msra.mxu0 %v570
        %590 = vmatprep.subr.bf16.mxu0 0
        %591 = vmatpush1.bf16.msra.mxu0 %v571
        %592 = vmatprep.subr.bf16.mxu0 0
        %593 = vmatpush1.bf16.msra.mxu0 %v572
        %594 = vmatprep.subr.bf16.mxu0 0
        %595 = vmatpush1.bf16.msra.mxu0 %v573
        %596 = vmatprep.subr.bf16.mxu0 0
        %597 = vmatpush1.bf16.msra.mxu0 %v574
        %598 = vmatprep.subr.bf16.mxu0 0
        %599 = vmatpush1.bf16.msra.mxu0 %v575
        %600 = vmatprep.subr.bf16.mxu0 0
        %601 = vmatpush1.bf16.msra.mxu0 0
        %602 = vmatprep.subr.bf16.mxu0 0
        %603 = vmatpush1.bf16.msra.mxu0 0
        %604 = vmatprep.subr.bf16.mxu0 0
        %605 = vmatpush1.bf16.msra.mxu0 0
        %606 = vmatprep.subr.bf16.mxu0 0
        %607 = vmatpush1.bf16.msra.mxu0 0
        %608 = vmatprep.subr.bf16.mxu0 0
        %609 = vmatpush1.bf16.msra.mxu0 0
        %610 = vmatprep.subr.bf16.mxu0 0
        %611 = vmatpush1.bf16.msra.mxu0 0
        %612 = vmatprep.subr.bf16.mxu0 0
        %613 = vmatpush1.bf16.msra.mxu0 0
        %614 = vmatprep.subr.bf16.mxu0 0
        %615 = vmatpush1.bf16.msra.mxu0 0
        %616 = vmatprep.mubr.bf16.mxu0 0
        %617 = vmatmul.mubr.bf16.gmra.mrb[0].mxu0 %v534
        %v618 = vpop.f32.mrb[0].mxu0
        %v619 = vadd.f32 0.0, %v618
        %v620 = vpop.f32.mrb[0].mxu0
        %v621 = vpop.f32.mrb[0].mxu0
        %v622 = vadd.f32 0.0, %v621
        %v623 = vpop.f32.mrb[0].mxu0
        %624 = vdwg.mxu0
        %v625 = vmul.f32 %v619, %v619
        %v626 = vmul.f32 %v622, %v622
        %627 = vadd.xlane.f32.xlu0 %v625
        %v628 = vpop.xlane.xlu0 %627
        %629 = vadd.xlane.f32.xlu0 %v626
        %v630 = vpop.xlane.xlu0 %629
        %v631 = vadd.f32 %v628, 1e-12
        %v632 = vadd.f32 %v630, 1e-12
        %v633 = vrsqrt.pop %v631
        %v634 = vrsqrt.pop %v632
        %v635 = vmul.f32 %v619, %v633
        %v636 = vmul.f32 %v622, %v634
        %637 = vst [vmem:[%s333] sm:$0xff] %v635
        %638 = vst [vmem:[%s333 + $0x8] sm:$0xff] %v636
        %v639 = vpack.c.bf16 %v636, %v635
        %v640 = vld [vmem:[#allocation2] sm:$0xff]
        %v641 = vld [vmem:[#allocation2 + $0x8] sm:$0xff]
        %642 = vmatprep.subr.bf16.mxu0 0
        %643 = vmatpush1.bf16.xpose.msra.mxu0 %v640
        %644 = vmatprep.subr.bf16.mxu0 0
        %645 = vmatpush1.bf16.xpose.msra.mxu0 %v641
        %646 = vmatprep.subr.bf16.mxu0 0
        %647 = vmatpush1.bf16.xpose.msra.mxu0 0
        %648 = vmatprep.subr.bf16.mxu0 0
        %649 = vmatpush1.bf16.xpose.msra.mxu0 0
        %650 = vmatprep.subr.bf16.mxu0 0
        %651 = vmatpush1.bf16.xpose.msra.mxu0 0
        %652 = vmatprep.subr.bf16.mxu0 0
        %653 = vmatpush1.bf16.xpose.msra.mxu0 0
        %654 = vmatprep.subr.bf16.mxu0 0
        %655 = vmatpush1.bf16.xpose.msra.mxu0 0
        %656 = vmatprep.subr.bf16.mxu0 0
        %657 = vmatpush1.bf16.xpose.msra.mxu0 0
        %658 = vmatprep.subr.bf16.mxu0 0
        %659 = vmatpush1.bf16.xpose.msra.mxu0 0
        %660 = vmatprep.subr.bf16.mxu0 0
        %661 = vmatpush1.bf16.xpose.msra.mxu0 0
        %662 = vmatprep.subr.bf16.mxu0 0
        %663 = vmatpush1.bf16.xpose.msra.mxu0 0
        %664 = vmatprep.subr.bf16.mxu0 0
        %665 = vmatpush1.bf16.xpose.msra.mxu0 0
        %666 = vmatprep.subr.bf16.mxu0 0
        %667 = vmatpush1.bf16.xpose.msra.mxu0 0
        %668 = vmatprep.subr.bf16.mxu0 0
        %669 = vmatpush1.bf16.xpose.msra.mxu0 0
        %670 = vmatprep.subr.bf16.mxu0 0
        %671 = vmatpush1.bf16.xpose.msra.mxu0 0
        %672 = vmatprep.subr.bf16.mxu0 0
        %673 = vmatpush1.bf16.xpose.msra.mxu0 0
        %674 = vmatprep.mubr.bf16.mxu0 0
        %675 = vmatmul.mubr.bf16.gmra.mrb[0].mxu0 %v639
        %v676 = vpop.f32.mrb[0].mxu0
        %v677 = vadd.f32 0.0, %v676
        %v678 = vpop.f32.mrb[0].mxu0
        %v679 = vpop.f32.mrb[0].mxu0
        %v680 = vadd.f32 0.0, %v679
        %v681 = vpop.f32.mrb[0].mxu0
        %682 = vdwg.mxu0
        %v683 = vsub.f32 %v677, 1.0
        %v684 = vsub.f32 %v680, 1.0
        %v685 = vstv %s341
        %v686 = vmul.f32 %v685, %v683
        %v687 = vmul.f32 %v685, %v684
        %v688 = vmul.f32 %v686, 1.442695
        %v689 = vpow.pop %v688
        %v690 = vmul.f32 %v687, 1.442695
        %v691 = vpow.pop %v690
        %vm692 = vcmask 261120
        %v693 = vsel %vm692, %v689, 0.0
        %694 = vadd.xlane.f32.xlu0 %v693
        %v695 = vpop.xlane.xlu0 %694
        %v696 = vsel %vm692, %v691, 0.0
        %697 = vadd.xlane.f32.xlu0 %v696
        %v698 = vpop.xlane.xlu0 %697
        %v699 = vlog2.pop %v695
        %v700 = vmul.f32 %v699, 0.6931472
        %v701 = vlog2.pop %v698
        %v702 = vmul.f32 %v701, 0.6931472
        %v703 = vadd.f32 %v685, %v700
        %v704 = vadd.f32 %v685, %v702
        %v705 = vld [vmem:[#allocation3] sm:$0x1]
        %v706 = vadd.f32 %v693, %v696
        %v707 = vrot.slane %v706, 4
        %v708 = vadd.f32 %v706, %v707
        %v709 = vrot.slane %v708, 2
        %v710 = vadd.f32 %v708, %v709
        %v711 = vrot.slane %v710, 1
        %v712 = vadd.f32 %v710, %v711
        %v713 = vadd.f32 %v705, %v712
        %vm714 = vcmask 253952
        %715 = vst.msk [vmem:[#allocation3] sm:$0x1] %vm714, %v713
        %s716 = smul.u32 %s29, 16
        %s717 = sshra.s32 %s716, 4
        %s718 = sand.u32 %s716, 15
        %s719 = smul.addr %s717, 8
        %s720 = scalar_lea.vmem [#allocation2], %s719
        %v721 = vld [vmem:[%s720] sm:$0xff]
        %v722 = vunpack.c.l.bf16 %v639
        %v723 = vunpack.c.h.bf16 %v639
        %v724 = vunpack.c.l.bf16 %v721
        %v725 = vunpack.c.h.bf16 %v721
        %v726 = vmul.f32 %v722, %v724
        %v727 = vmul.f32 %v723, %v725
        %728 = vadd.xlane.f32.xlu0 %v726
        %v729 = vpop.xlane.xlu0 %728
        %730 = vadd.xlane.f32.xlu0 %v727
        %v731 = vpop.xlane.xlu0 %730
        %v732 = vmul.f32 %v685, %v729
        %v733 = vmul.f32 %v685, %v731
        %v734 = vld [vmem:[#allocation4] sm:$0xff]
        %v735 = vld [vmem:[#allocation4 + $0x8] sm:$0xff]
        %v736 = vmul.f32 %v732, 2.0
        %v737 = vmul.f32 %v733, 2.0
        %v738 = vsub.f32 %v703, %v736
        %v739 = vsub.f32 %v704, %v737
        %v740 = vadd.f32 %v734, %v738
        %v741 = vadd.f32 %v735, %v739
        %vm742 = vcmask 7168
        %743 = vst.msk [vmem:[#allocation4] sm:$0xff] %vm742, %v740
        %744 = vst.msk [vmem:[#allocation4 + $0x8] sm:$0xff] %vm742, %v741
        %p745 = scmp.eq.s32.totalorder %s29, 1
        // Predicated region
        $region61: #{tpu_custom_call.1} parent=39 // pred_check
          %p746 = pneg %p745
        $region62: #{tpu_custom_call.1} parent=39 // pred_check_branch
          %748 = sbr.rel (%p746) target = $region64
        $region63: #{tpu_custom_call.1} parent=39 // pred_region
          %v749 = vld [vmem:[#allocation3] sm:$0x1]
          %v750 = vlog2.pop %v749
          %v751 = vmul.f32 %v750, 0.6931472
          %v752 = vadd.f32 %v685, %v751
          %v753 = vld [vmem:[#allocation4] sm:$0xff]
          %v754 = vld [vmem:[#allocation4 + $0x8] sm:$0xff]
          %v755 = vsel %vm742, %v753, 0.0
          %v756 = vsel %vm742, %v754, 0.0
          %v757 = vadd.f32 %v755, %v756
          %758 = vadd.xlane.f32.xlu0 %v757
          %v759 = vpop.xlane.xlu0 %758
          %v760 = vrot.slane %v759, 4
          %v761 = vadd.f32 %v759, %v760
          %v762 = vrot.slane %v761, 2
          %v763 = vadd.f32 %v761, %v762
          %v764 = vrot.slane %v763, 1
          %v765 = vadd.f32 %v763, %v764
          %s766 = vtos %v765
          %v767 = vstv %s766
          %v768 = vsel %vm714, %v752, 0.0
          %769 = vadd.xlane.f32.xlu0 %v768
          %v770 = vpop.xlane.xlu0 %769
          %v771 = vrot.slane %v770, 4
          %v772 = vadd.f32 %v770, %v771
          %v773 = vrot.slane %v772, 2
          %v774 = vadd.f32 %v772, %v773
          %v775 = vrot.slane %v774, 1
          %v776 = vadd.f32 %v774, %v775
          %s777 = vtos %v776
          %v778 = vstv %s777
          %v779 = vadd.f32 %v767, %v778
          %v780 = vmul.f32 %v779, 0.015625
          %vm781 = vcmask 0
          %782 = vst.msk [vmem:[#allocation17] sm:$0x1] %vm781, %v780
        $region64: #{tpu_custom_call.1} parent=39 // pred_fallthru
          _
        %s783 = sand.u32 %s147, 1
        %s784 = scalar_lea.sflag [#allocation8], %s783
        %s785 = sand.u32 %s147, 1
        %s786 = smul.addr %s785, 16
        %s787 = scalar_lea.vmem [#allocation14], %s786
        // Predicated region
        $region65: #{tpu_custom_call.1} parent=39 // pred_check
          %p788 = pneg %p157
        $region66: #{tpu_custom_call.1} parent=39 // pred_check_branch
          %790 = sbr.rel (%p788) target = $region68
        $region67: #{tpu_custom_call.1} parent=39 // pred_region
          %s791 = smul.u32 2, %s29
          %s793 = ssub.s32 256, 256
          %794 = vsyncadd %s784, %s793
          %s795 = smul.addr %s791, 128
          %s796 = scalar_lea.hbm %s5, %s795
          %s797 = sshll.u32 %s787, 4
          %s798 = int_to_ptr.vmem [resolvable:$true] %s797
          %803 = dma.vmem_to_hbm [thread:$0]  %s798, 256, %s796, %s784, 128, 128, 8
        $region68: #{tpu_custom_call.1} parent=39 // pred_fallthru
          _
        // Predicated region
        $region69: #{tpu_custom_call.1} parent=39 // pred_check
          %p804 = pneg %p178
        $region70: #{tpu_custom_call.1} parent=39 // pred_check_branch
          %806 = sbr.rel (%p804) target = $region72
        $region71: #{tpu_custom_call.1} parent=39 // pred_region
          %s808 = ssub.s32 512, 512
          %809 = vsyncadd [#allocation16], %s808
          %s810 = sshll.u32 [#allocation15], 4
          %s811 = int_to_ptr.vmem [resolvable:$true] %s810
          %816 = dma.vmem_to_hbm [thread:$0]  %s811, 512, %s6, [#allocation16], 128, 128, 8
        $region72: #{tpu_custom_call.1} parent=39 // pred_fallthru
          _
        // Predicated region
        $region73: #{tpu_custom_call.1} parent=39 // pred_check
          %p817 = pneg %p199
        $region74: #{tpu_custom_call.1} parent=39 // pred_check_branch
          %819 = sbr.rel (%p817) target = $region76
        $region75: #{tpu_custom_call.1} parent=39 // pred_region
          %s821 = ssub.s32 16, 16
          %822 = vsyncadd [#allocation16], %s821
          %s824 = sshll.u32 [#allocation17], 4
          %s825 = int_to_ptr.vmem [resolvable:$true] %s824
          %827 = dma.vmem_to_hbm [thread:$0]  %s825, 16, %s7, [#allocation16]
        $region76: #{tpu_custom_call.1} parent=39 // pred_fallthru
          _
        // Predicated region
        $region77: #{tpu_custom_call.1} parent=39 // pred_check
          %p828 = pneg %p178
        $region78: #{tpu_custom_call.1} parent=39 // pred_check_branch
          %830 = sbr.rel (%p828) target = $region80
        $region79: #{tpu_custom_call.1} parent=39 // pred_region
          %831 = dma.done [#allocation16], 512
        $region80: #{tpu_custom_call.1} parent=39 // pred_fallthru
          _
        // Predicated region
        $region81: #{tpu_custom_call.1} parent=39 // pred_check
          %p832 = pneg %p199
        $region82: #{tpu_custom_call.1} parent=39 // pred_check_branch
          %834 = sbr.rel (%p832) target = $region84
        $region83: #{tpu_custom_call.1} parent=39 // pred_region
          %835 = dma.done [#allocation16], 16
        $region84: #{tpu_custom_call.1} parent=39 // pred_fallthru
          _
      $region40: #{tpu_custom_call.1} parent=5 // pred_fallthru
        _
      %p836 = scmp.le.s32.totalorder 2, %s24
      // Predicated region
      $region85: #{tpu_custom_call.1} parent=5 // pred_check
        %p837 = pneg %p836
      $region86: #{tpu_custom_call.1} parent=5 // pred_check_branch
        %839 = sbr.rel (%p837) target = $region88
      $region87: #{tpu_custom_call.1} parent=5 // pred_region
        %s840 = ssub.s32 %s24, 2
        // Predicated region
        $region89: #{tpu_custom_call.1} parent=87 // pred_check
          %p841 = pneg %p163
        $region90: #{tpu_custom_call.1} parent=87 // pred_check_branch
          %843 = sbr.rel (%p841) target = $region92
        $region91: #{tpu_custom_call.1} parent=87 // pred_region
          %s844 = sand.u32 %s148, 1
          %s845 = scalar_lea.sflag [#allocation8], %s844
          %s846 = sand.u32 %s148, 1
          %s847 = smul.addr %s846, 16
          %s848 = scalar_lea.vmem [#allocation14], %s847
          %849 = dma.done %s845, 256
        $region92: #{tpu_custom_call.1} parent=87 // pred_fallthru
          _
      $region88: #{tpu_custom_call.1} parent=5 // pred_fallthru
        _
    $region6: #{tpu_custom_call.1} parent=1 // loop_footer
      %s28 = sadd.s32 1, %s24
    $region7: #{tpu_custom_call.1} parent=1 // loop_footer_branch
      %23 = sbr.rel target = $region3
    $region8: #{tpu_custom_call.1} parent=1 // loop_exit
      _
    %850 = vsyncpa [#allocation7], 1
    %s851 = scalar_lea.sflag [#allocation7], 1
    %852 = vsyncpa %s851, 1
    %853 = vsyncpa [#allocation10], 1
    %854 = vsyncpa [#allocation13], 1
    %855 = vsyncpa [#allocation8], 1
    %s856 = scalar_lea.sflag [#allocation8], 1
    %857 = vsyncpa %s856, 1
    %858 = vsyncpa [#allocation16], 1

// kernel: tpu_custom_call.1
$region0: #{tpu_custom_call.1}
  #allocation0 [shape = 'u32[]', space=smem, size = 0x4, offset = 0x4, fixed_abs, tag = 'smem constant byte address 0x4 - core index']
  #allocation1 [shape = 'u32[144,128]{1,0:T(1,128)}', space=vmem, size = 0x12000, scoped, tag = 'internal scratch']
  #allocation2 [shape = 'bf16[32,128]{1,0:T(16,128)(2,1)}', space=vmem, size = 0x2000, scoped, tag = 'scratch operand']
  #allocation3 [shape = 'f32[1,32]{1,0:T(1,128)}', space=vmem, size = 0x200, scoped, tag = 'scratch operand']
  #allocation4 [shape = 'f32[16,1]{1,0:T(8,128)}', space=vmem, size = 0x2000, scoped, tag = 'scratch operand']
  #allocation5 [shape = 'f32[1]{0:T(128)S(6)}', space=smem, size = 0x200, scoped, tag = 'scoped memory for tpu_custom_call.1']
  %s0 = inlined_call_operand.<no memory space> [shape: f32[1], index: 0, kind: input, shape index: {}]
  %s1 = inlined_call_operand.hbm [shape: bf16[32,128], index: 1, kind: input, shape index: {}]
  %s2 = inlined_call_operand.hbm [shape: bf16[32,128], index: 2, kind: input, shape index: {}]
  %s3 = inlined_call_operand.hbm [shape: bf16[128,128], index: 3, kind: input, shape index: {}]
  %s4 = inlined_call_operand.hbm [shape: bf16[128,128], index: 4, kind: input, shape index: {}]
  %s5 = inlined_call_operand.hbm [shape: f32[32,128], index: 5, kind: output, shape index: {0}]
  %s6 = inlined_call_operand.hbm [shape: f32[32,128], index: 6, kind: output, shape index: {1}]
  %s7 = inlined_call_operand.hbm [shape: f32[1,1], index: 7, kind: output, shape index: {2}]
  %8 = xla_tuple %s5, %s6, %s7
  %s9 = sld [smem:[#allocation0]]
  $region93: #{tpu_custom_call.1} parent=0
    _
  %s11 = ssub.s32 1, %s9
  %s12 = scalar_select 0, %s11, %s9
  %13 = sst [smem:[#allocation5]] %s0
  $region1: #{tpu_custom_call.1} parent=0
    #allocation6 [shape = 'u8[8192]{0}', space=vmem, size = 0x2000, scoped, tag = 'input window, operand 1']
    #allocation7 [shape = 's32[2]{0}', space=sflag, size = 0x8, scoped, tag = 'scoped memory for tpu_custom_call.1']
    #allocation8 [shape = 's32[2]{0}', space=sflag, size = 0x8, scoped, tag = 'scoped memory for tpu_custom_call.1']
    #allocation9 [shape = 'u8[8192]{0}', space=vmem, size = 0x2000, scoped, tag = 'input window, operand 2, single buffered']
    #allocation10 [shape = 's32[1]{0}', space=sflag, size = 0x4, scoped, tag = 'scoped memory for tpu_custom_call.1']
    #allocation11 [shape = 'u8[32768]{0}', space=vmem, size = 0x8000, scoped, tag = 'input window, operand 3, single buffered']
    #allocation12 [shape = 'u8[32768]{0}', space=vmem, size = 0x8000, scoped, tag = 'input window, operand 4, single buffered']
    #allocation13 [shape = 's32[1]{0}', space=sflag, size = 0x4, scoped, tag = 'scoped memory for tpu_custom_call.1']
    #allocation14 [shape = 'u8[16384]{0}', space=vmem, size = 0x4000, scoped, tag = 'output window, operand 0']
    #allocation15 [shape = 'u8[16384]{0}', space=vmem, size = 0x4000, scoped, tag = 'output window, operand 1, single buffered']
    #allocation16 [shape = 's32[1]{0}', space=sflag, size = 0x4, scoped, tag = 'scoped memory for tpu_custom_call.1']
    #allocation17 [shape = 'u8[512]{0}', space=vmem, size = 0x400, scoped, tag = 'output window, operand 2, single buffered']
    %14 = vsyncpa [#allocation7], 0
    %s15 = scalar_lea.sflag [#allocation7], 1
    %16 = vsyncpa %s15, 0
    %17 = vsyncpa [#allocation10], 0
    %18 = vsyncpa [#allocation13], 0
    %19 = vsyncpa [#allocation8], 0
    %s20 = scalar_lea.sflag [#allocation8], 1
    %21 = vsyncpa %s20, 0
    %22 = vsyncpa [#allocation16], 0
    loop: start=0, step=1, limit=4
    $region2: #{tpu_custom_call.1} parent=1 // loop_pre_header
      _
    $region3: #{tpu_custom_call.1} parent=1 // loop_header
      %s24 = sphi 0, %s28
      %p25 = scmp.ge.s32.totalorder %s24, 4
      %s32 = sphi 0, %s32
      %s34 = sphi 0, %s32
      %s35 = sphi 0, %s34
      %s49 = sphi 0, %s35
      %s55 = sphi 0, %s57
      %s58 = sphi 0, %s55
      %s59 = sphi 0, %s58
      %s75 = sphi 0, %s59
      %s79 = sphi 0, %s79
      %s81 = sphi 0, %s79
      %s82 = sphi 0, %s81
      %s96 = sphi 0, %s82
      %s100 = sphi 0, %s100
      %s102 = sphi 0, %s100
      %s103 = sphi 0, %s102
      %s117 = sphi 0, %s103
      %s121 = sphi 0, %s121
      %s123 = sphi 0, %s121
      %s124 = sphi 0, %s123
      %s138 = sphi 0, %s124
      %s144 = sphi 0, %s146
      %s147 = sphi 0, %s144
      %s148 = sphi 0, %s147
      %s164 = sphi 0, %s148
      %s168 = sphi 0, %s168
      %s170 = sphi 0, %s168
      %s171 = sphi 0, %s170
      %s185 = sphi 0, %s171
      %s189 = sphi 0, %s189
      %s191 = sphi 0, %s189
      %s192 = sphi 0, %s191
      %s206 = sphi 0, %s192
    $region4: #{tpu_custom_call.1} parent=1 // loop_header_branch
      %27 = sbr.rel (%p25) target = $region8
    $region5: #{tpu_custom_call.1} parent=1 // loop_body
      %s29 = ssub.s32 %s24, 1
      %s30 = ssub.s32 %s24, 2
      %s31 = sadd.s32 %s24, 1
      %s33 = sadd.s32 %s32, 1
      %p36 = scmp.eq.s32.totalorder %s24, 1
      %p37 = scmp.ne.s32.totalorder %s32, %s34
      %p38 = scmp.eq.s32.totalorder %s24, 0
      %p39 = por %p37, %p38
      %p40 = scmp.ne.s32.totalorder %s32, %s34
      %p41 = scmp.eq.s32.totalorder %s29, 1
      %p42 = por %p40, %p41
      %p43 = scmp.ne.s32.totalorder %s34, %s35
      %p44 = scmp.eq.s32.totalorder %s29, 0
      %p45 = por %p43, %p44
      %p46 = scmp.ne.s32.totalorder %s34, %s35
      %p47 = scmp.eq.s32.totalorder %s30, 1
      %p48 = por %p46, %p47
      %p50 = scmp.ne.s32.totalorder %s35, %s49
      %p51 = scmp.eq.s32.totalorder %s30, 0
      %p52 = por %p50, %p51
      %s53 = ssub.s32 %s24, %s31
      %p54 = scmp.eq.s32.totalorder %s53, 0
      %s56 = sadd.s32 %s55, 1
      %s57 = scalar_select %p54, %s55, %s56
      %p60 = pneg %p54
      %p61 = scmp.eq.s32.totalorder %s24, 1
      %p62 = por %p60, %p61
      %p63 = scmp.ne.s32.totalorder %s55, %s58
      %p64 = scmp.eq.s32.totalorder %s24, 0
      %p65 = por %p63, %p64
      %p66 = scmp.ne.s32.totalorder %s55, %s58
      %p67 = scmp.eq.s32.totalorder %s29, 1
      %p68 = por %p66, %p67
      %p69 = scmp.ne.s32.totalorder %s58, %s59
      %p70 = scmp.eq.s32.totalorder %s29, 0
      %p71 = por %p69, %p70
      %p72 = scmp.ne.s32.totalorder %s58, %s59
      %p73 = scmp.eq.s32.totalorder %s30, 1
      %p74 = por %p72, %p73
      %p76 = scmp.ne.s32.totalorder %s59, %s75
      %p77 = scmp.eq.s32.totalorder %s30, 0
      %p78 = por %p76, %p77
      %s80 = sadd.s32 %s79, 1
      %p83 = scmp.eq.s32.totalorder %s24, 1
      %p84 = scmp.ne.s32.totalorder %s79, %s81
      %p85 = scmp.eq.s32.totalorder %s24, 0
      %p86 = por %p84, %p85
      %p87 = scmp.ne.s32.totalorder %s79, %s81
      %p88 = scmp.eq.s32.totalorder %s29, 1
      %p89 = por %p87, %p88
      %p90 = scmp.ne.s32.totalorder %s81, %s82
      %p91 = scmp.eq.s32.totalorder %s29, 0
      %p92 = por %p90, %p91
      %p93 = scmp.ne.s32.totalorder %s81, %s82
      %p94 = scmp.eq.s32.totalorder %s30, 1
      %p95 = por %p93, %p94
      %p97 = scmp.ne.s32.totalorder %s82, %s96
      %p98 = scmp.eq.s32.totalorder %s30, 0
      %p99 = por %p97, %p98
      %s101 = sadd.s32 %s100, 1
      %p104 = scmp.eq.s32.totalorder %s24, 1
      %p105 = scmp.ne.s32.totalorder %s100, %s102
      %p106 = scmp.eq.s32.totalorder %s24, 0
      %p107 = por %p105, %p106
      %p108 = scmp.ne.s32.totalorder %s100, %s102
      %p109 = scmp.eq.s32.totalorder %s29, 1
      %p110 = por %p108, %p109
      %p111 = scmp.ne.s32.totalorder %s102, %s103
      %p112 = scmp.eq.s32.totalorder %s29, 0
      %p113 = por %p111, %p112
      %p114 = scmp.ne.s32.totalorder %s102, %s103
      %p115 = scmp.eq.s32.totalorder %s30, 1
      %p116 = por %p114, %p115
      %p118 = scmp.ne.s32.totalorder %s103, %s117
      %p119 = scmp.eq.s32.totalorder %s30, 0
      %p120 = por %p118, %p119
      %s122 = sadd.s32 %s121, 1
      %p125 = scmp.eq.s32.totalorder %s24, 1
      %p126 = scmp.ne.s32.totalorder %s121, %s123
      %p127 = scmp.eq.s32.totalorder %s24, 0
      %p128 = por %p126, %p127
      %p129 = scmp.ne.s32.totalorder %s121, %s123
      %p130 = scmp.eq.s32.totalorder %s29, 1
      %p131 = por %p129, %p130
      %p132 = scmp.ne.s32.totalorder %s123, %s124
      %p133 = scmp.eq.s32.totalorder %s29, 0
      %p134 = por %p132, %p133
      %p135 = scmp.ne.s32.totalorder %s123, %s124
      %p136 = scmp.eq.s32.totalorder %s30, 1
      %p137 = por %p135, %p136
      %p139 = scmp.ne.s32.totalorder %s124, %s138
      %p140 = scmp.eq.s32.totalorder %s30, 0
      %p141 = por %p139, %p140
      %s142 = ssub.s32 %s24, %s31
      %p143 = scmp.eq.s32.totalorder %s142, 0
      %s145 = sadd.s32 %s144, 1
      %s146 = scalar_select %p143, %s144, %s145
      %p149 = pneg %p143
      %p150 = scmp.eq.s32.totalorder %s24, 1
      %p151 = por %p149, %p150
      %p152 = scmp.ne.s32.totalorder %s144, %s147
      %p153 = scmp.eq.s32.totalorder %s24, 0
      %p154 = por %p152, %p153
      %p155 = scmp.ne.s32.totalorder %s144, %s147
      %p156 = scmp.eq.s32.totalorder %s29, 1
      %p157 = por %p155, %p156
      %p158 = scmp.ne.s32.totalorder %s147, %s148
      %p159 = scmp.eq.s32.totalorder %s29, 0
      %p160 = por %p158, %p159
      %p161 = scmp.ne.s32.totalorder %s147, %s148
      %p162 = scmp.eq.s32.totalorder %s30, 1
      %p163 = por %p161, %p162
      %p165 = scmp.ne.s32.totalorder %s148, %s164
      %p166 = scmp.eq.s32.totalorder %s30, 0
      %p167 = por %p165, %p166
      %s169 = sadd.s32 %s168, 1
      %p172 = scmp.eq.s32.totalorder %s24, 1
      %p173 = scmp.ne.s32.totalorder %s168, %s170
      %p174 = scmp.eq.s32.totalorder %s24, 0
      %p175 = por %p173, %p174
      %p176 = scmp.ne.s32.totalorder %s168, %s170
      %p177 = scmp.eq.s32.totalorder %s29, 1
      %p178 = por %p176, %p177
      %p179 = scmp.ne.s32.totalorder %s170, %s171
      %p180 = scmp.eq.s32.totalorder %s29, 0
      %p181 = por %p179, %p180
      %p182 = scmp.ne.s32.totalorder %s170, %s171
      %p183 = scmp.eq.s32.totalorder %s30, 1
      %p184 = por %p182, %p183
      %p186 = scmp.ne.s32.totalorder %s171, %s185
      %p187 = scmp.eq.s32.totalorder %s30, 0
      %p188 = por %p186, %p187
      %s190 = sadd.s32 %s189, 1
      %p193 = scmp.eq.s32.totalorder %s24, 1
      %p194 = scmp.ne.s32.totalorder %s189, %s191
      %p195 = scmp.eq.s32.totalorder %s24, 0
      %p196 = por %p194, %p195
      %p197 = scmp.ne.s32.totalorder %s189, %s191
      %p198 = scmp.eq.s32.totalorder %s29, 1
      %p199 = por %p197, %p198
      %p200 = scmp.ne.s32.totalorder %s191, %s192
      %p201 = scmp.eq.s32.totalorder %s29, 0
      %p202 = por %p200, %p201
      %p203 = scmp.ne.s32.totalorder %s191, %s192
      %p204 = scmp.eq.s32.totalorder %s30, 1
      %p205 = por %p203, %p204
      %p207 = scmp.ne.s32.totalorder %s192, %s206
      %p208 = scmp.eq.s32.totalorder %s30, 0
      %p209 = por %p207, %p208
      %p210 = scmp.le.s32.totalorder 1, %s24
      %p211 = scmp.lt.s32.totalorder %s24, 3
      %p212 = pnand %p210, %p211
      %p213 = pneg %p212
      // Predicated region
      $region9: #{tpu_custom_call.1} parent=5 // pred_check
        _
      $region10: #{tpu_custom_call.1} parent=5 // pred_check_branch
        %215 = sbr.rel (%p212) target = $region12
      $region11: #{tpu_custom_call.1} parent=5 // pred_region
        %s216 = ssub.s32 %s24, 1
        // Predicated region
        $region13: #{tpu_custom_call.1} parent=11 // pred_check
          %p217 = pneg %p45
        $region14: #{tpu_custom_call.1} parent=11 // pred_check_branch
          %219 = sbr.rel (%p217) target = $region16
        $region15: #{tpu_custom_call.1} parent=11 // pred_region
          _
        $region16: #{tpu_custom_call.1} parent=11 // pred_fallthru
          _
        // Predicated region
        $region17: #{tpu_custom_call.1} parent=11 // pred_check
          %p220 = pneg %p92
        $region18: #{tpu_custom_call.1} parent=11 // pred_check_branch
          %222 = sbr.rel (%p220) target = $region20
        $region19: #{tpu_custom_call.1} parent=11 // pred_region
          %s224 = ssub.s32 256, 256
          %225 = vsyncadd [#allocation10], %s224
          %s226 = sshll.u32 [#allocation9], 4
          %s227 = int_to_ptr.vmem [resolvable:$true] %s226
          %232 = dma.hbm_to_vmem [thread:$0]  %s2, 256, %s227, [#allocation10], 64, 64, 4
        $region20: #{tpu_custom_call.1} parent=11 // pred_fallthru
          _
        // Predicated region
        $region21: #{tpu_custom_call.1} parent=11 // pred_check
          %p233 = pneg %p113
        $region22: #{tpu_custom_call.1} parent=11 // pred_check_branch
          %235 = sbr.rel (%p233) target = $region24
        $region23: #{tpu_custom_call.1} parent=11 // pred_region
          %s237 = ssub.s32 1024, 1024
          %238 = vsyncadd [#allocation10], %s237
          %s239 = sshll.u32 [#allocation11], 4
          %s240 = int_to_ptr.vmem [resolvable:$true] %s239
          %245 = dma.hbm_to_vmem [thread:$0]  %s3, 1024, %s240, [#allocation10], 64, 64, 4
        $region24: #{tpu_custom_call.1} parent=11 // pred_fallthru
          _
        // Predicated region
        $region25: #{tpu_custom_call.1} parent=11 // pred_check
          %p246 = pneg %p134
        $region26: #{tpu_custom_call.1} parent=11 // pred_check_branch
          %248 = sbr.rel (%p246) target = $region28
        $region27: #{tpu_custom_call.1} parent=11 // pred_region
          %s250 = ssub.s32 1024, 1024
          %251 = vsyncadd [#allocation13], %s250
          %s252 = sshll.u32 [#allocation12], 4
          %s253 = int_to_ptr.vmem [resolvable:$true] %s252
          %258 = dma.hbm_to_vmem [thread:$0]  %s4, 1024, %s253, [#allocation13], 64, 64, 4
        $region28: #{tpu_custom_call.1} parent=11 // pred_fallthru
          _
      $region12: #{tpu_custom_call.1} parent=5 // pred_fallthru
        _
      %p259 = scmp.lt.s32.totalorder %s24, 2
      // Predicated region
      $region29: #{tpu_custom_call.1} parent=5 // pred_check
        %p260 = pneg %p259
      $region30: #{tpu_custom_call.1} parent=5 // pred_check_branch
        %262 = sbr.rel (%p260) target = $region32
      $region31: #{tpu_custom_call.1} parent=5 // pred_region
        // Predicated region
        $region33: #{tpu_custom_call.1} parent=31 // pred_check
          %p263 = pneg %p65
        $region34: #{tpu_custom_call.1} parent=31 // pred_check_branch
          %265 = sbr.rel (%p263) target = $region36
        $region35: #{tpu_custom_call.1} parent=31 // pred_region
          %s266 = sand.u32 %s55, 1
          %s267 = scalar_lea.sflag [#allocation7], %s266
          %s268 = sand.u32 %s55, 1
          %s269 = smul.addr %s268, 8
          %s270 = scalar_lea.vmem [#allocation6], %s269
          %s271 = smul.u32 2, %s24
          %s273 = ssub.s32 128, 128
          %274 = vsyncadd %s267, %s273
          %s275 = smul.addr %s271, 64
          %s276 = scalar_lea.hbm %s1, %s275
          %s277 = sshll.u32 %s270, 4
          %s278 = int_to_ptr.vmem [resolvable:$true] %s277
          %283 = dma.hbm_to_vmem [thread:$0]  %s276, 128, %s278, %s267, 64, 64, 4
        $region36: #{tpu_custom_call.1} parent=31 // pred_fallthru
          _
      $region32: #{tpu_custom_call.1} parent=5 // pred_fallthru
        _
      %p284 = scmp.le.s32.totalorder 1, %s24
      %p285 = scmp.lt.s32.totalorder %s24, 3
      %p286 = pnand %p284, %p285
      %p287 = pneg %p286
      // Predicated region
      $region37: #{tpu_custom_call.1} parent=5 // pred_check
        _
      $region38: #{tpu_custom_call.1} parent=5 // pred_check_branch
        %289 = sbr.rel (%p286) target = $region40
      $region39: #{tpu_custom_call.1} parent=5 // pred_region
        %s290 = ssub.s32 %s24, 1
        %s291 = sand.u32 %s58, 1
        %s292 = scalar_lea.sflag [#allocation7], %s291
        %s293 = sand.u32 %s58, 1
        %s294 = smul.addr %s293, 8
        %s295 = scalar_lea.vmem [#allocation6], %s294
        // Predicated region
        $region41: #{tpu_custom_call.1} parent=39 // pred_check
          %p296 = pneg %p71
        $region42: #{tpu_custom_call.1} parent=39 // pred_check_branch
          %298 = sbr.rel (%p296) target = $region44
        $region43: #{tpu_custom_call.1} parent=39 // pred_region
          %299 = dma.done %s292, 128
        $region44: #{tpu_custom_call.1} parent=39 // pred_fallthru
          _
        // Predicated region
        $region45: #{tpu_custom_call.1} parent=39 // pred_check
          %p300 = pneg %p92
        $region46: #{tpu_custom_call.1} parent=39 // pred_check_branch
          %302 = sbr.rel (%p300) target = $region48
        $region47: #{tpu_custom_call.1} parent=39 // pred_region
          %303 = dma.done [#allocation10], 256
        $region48: #{tpu_custom_call.1} parent=39 // pred_fallthru
          _
        // Predicated region
        $region49: #{tpu_custom_call.1} parent=39 // pred_check
          %p304 = pneg %p113
        $region50: #{tpu_custom_call.1} parent=39 // pred_check_branch
          %306 = sbr.rel (%p304) target = $region52
        $region51: #{tpu_custom_call.1} parent=39 // pred_region
          %307 = dma.done [#allocation10], 1024
        $region52: #{tpu_custom_call.1} parent=39 // pred_fallthru
          _
        // Predicated region
        $region53: #{tpu_custom_call.1} parent=39 // pred_check
          %p308 = pneg %p134
        $region54: #{tpu_custom_call.1} parent=39 // pred_check_branch
          %310 = sbr.rel (%p308) target = $region56
        $region55: #{tpu_custom_call.1} parent=39 // pred_region
          %311 = dma.done [#allocation13], 1024
        $region56: #{tpu_custom_call.1} parent=39 // pred_fallthru
          _
        %p312 = pneg %p45
        %p313 = pneg %p42
        %s314 = sand.u32 %s58, 1
        %s315 = scalar_lea.sflag [#allocation7], %s314
        %s316 = sand.u32 %s58, 1
        %s317 = smul.addr %s316, 8
        %s318 = scalar_lea.vmem [#allocation6], %s317
        %p319 = pneg %p71
        %p320 = pneg %p68
        %p321 = pneg %p92
        %p322 = pneg %p89
        %p323 = pneg %p113
        %p324 = pneg %p110
        %p325 = pneg %p134
        %p326 = pneg %p131
        %p327 = pneg %p160
        %p328 = pneg %p157
        %s329 = sand.u32 %s147, 1
        %s330 = scalar_lea.sflag [#allocation8], %s329
        %s331 = sand.u32 %s147, 1
        %s332 = smul.addr %s331, 16
        %s333 = scalar_lea.vmem [#allocation14], %s332
        %p334 = pneg %p181
        %p335 = pneg %p178
        %p336 = pneg %p202
        %p337 = pneg %p199
        %s338 = smul.u32 2, %s29
        %s339 = smul.u32 2, %s29
        %s341 = sld [smem:[#allocation5]]
        %p342 = scmp.eq.s32.totalorder %s29, 0
        // Predicated region
        $region57: #{tpu_custom_call.1} parent=39 // pred_check
          %p343 = pneg %p342
        $region58: #{tpu_custom_call.1} parent=39 // pred_check_branch
          %345 = sbr.rel (%p343) target = $region60
        $region59: #{tpu_custom_call.1} parent=39 // pred_region
          %v346 = vld [vmem:[#allocation9] sm:$0xf]
          %v347 = vld [vmem:[#allocation9 + $0x4] sm:$0xf]
          %v348 = vld [vmem:[#allocation9 + $0x8] sm:$0xf]
          %v349 = vld [vmem:[#allocation9 + $0xc] sm:$0xf]
          %v350 = vld [vmem:[#allocation12] sm:$0xf]
          %v351 = vld [vmem:[#allocation12 + $0x4] sm:$0xf]
          %v352 = vld [vmem:[#allocation12 + $0x8] sm:$0xf]
          %v353 = vld [vmem:[#allocation12 + $0xc] sm:$0xf]
          %v354 = vld [vmem:[#allocation12 + $0x10] sm:$0xf]
          %v355 = vld [vmem:[#allocation12 + $0x14] sm:$0xf]
          %v356 = vld [vmem:[#allocation12 + $0x18] sm:$0xf]
          %v357 = vld [vmem:[#allocation12 + $0x1c] sm:$0xf]
          %v358 = vld [vmem:[#allocation12 + $0x20] sm:$0xf]
          %v359 = vld [vmem:[#allocation12 + $0x24] sm:$0xf]
          %v360 = vld [vmem:[#allocation12 + $0x28] sm:$0xf]
          %v361 = vld [vmem:[#allocation12 + $0x2c] sm:$0xf]
          %v362 = vld [vmem:[#allocation12 + $0x30] sm:$0xf]
          %v363 = vld [vmem:[#allocation12 + $0x34] sm:$0xf]
          %v364 = vld [vmem:[#allocation12 + $0x38] sm:$0xf]
          %v365 = vld [vmem:[#allocation12 + $0x3c] sm:$0xf]
          %v370 = vunpack.c.l.b16 %v346
          %v371 = vunpack.c.l.b16 %v347
          %v372 = vunpack.c.l.b16 %v348
          %v373 = vunpack.c.l.b16 %v349
          %v374 = vpack.c.b16 %v371, %v370
          %v375 = vpack.c.b16 %v373, %v372
          %v394 = vunpack.c.l.b16 %v350
          %v395 = vunpack.c.l.b16 %v351
          %v396 = vunpack.c.l.b16 %v352
          %v397 = vunpack.c.l.b16 %v353
          %v398 = vunpack.c.l.b16 %v354
          %v399 = vunpack.c.l.b16 %v355
          %v400 = vunpack.c.l.b16 %v356
          %v401 = vunpack.c.l.b16 %v357
          %v402 = vunpack.c.l.b16 %v358
          %v403 = vunpack.c.l.b16 %v359
          %v404 = vunpack.c.l.b16 %v360
          %v405 = vunpack.c.l.b16 %v361
          %v406 = vunpack.c.l.b16 %v362
          %v407 = vunpack.c.l.b16 %v363
          %v408 = vunpack.c.l.b16 %v364
          %v409 = vunpack.c.l.b16 %v365
          %v410 = vpack.c.b16 %v395, %v394
          %v411 = vpack.c.b16 %v397, %v396
          %v412 = vpack.c.b16 %v399, %v398
          %v413 = vpack.c.b16 %v401, %v400
          %v414 = vpack.c.b16 %v403, %v402
          %v415 = vpack.c.b16 %v405, %v404
          %v416 = vpack.c.b16 %v407, %v406
          %v417 = vpack.c.b16 %v409, %v408
          %426 = vmatprep.subr.bf16.mxu0 0
          %427 = vmatpush1.bf16.msra.mxu0 %v410
          %428 = vmatprep.subr.bf16.mxu0 0
          %429 = vmatpush1.bf16.msra.mxu0 %v411
          %430 = vmatprep.subr.bf16.mxu0 0
          %431 = vmatpush1.bf16.msra.mxu0 %v412
          %432 = vmatprep.subr.bf16.mxu0 0
          %433 = vmatpush1.bf16.msra.mxu0 %v413
          %434 = vmatprep.subr.bf16.mxu0 0
          %435 = vmatpush1.bf16.msra.mxu0 %v414
          %436 = vmatprep.subr.bf16.mxu0 0
          %437 = vmatpush1.bf16.msra.mxu0 %v415
          %438 = vmatprep.subr.bf16.mxu0 0
          %439 = vmatpush1.bf16.msra.mxu0 %v416
          %440 = vmatprep.subr.bf16.mxu0 0
          %441 = vmatpush1.bf16.msra.mxu0 %v417
          %442 = vmatprep.subr.bf16.mxu0 0
          %443 = vmatpush1.bf16.msra.mxu0 0
          %444 = vmatprep.subr.bf16.mxu0 0
          %445 = vmatpush1.bf16.msra.mxu0 0
          %446 = vmatprep.subr.bf16.mxu0 0
          %447 = vmatpush1.bf16.msra.mxu0 0
          %448 = vmatprep.subr.bf16.mxu0 0
          %449 = vmatpush1.bf16.msra.mxu0 0
          %450 = vmatprep.subr.bf16.mxu0 0
          %451 = vmatpush1.bf16.msra.mxu0 0
          %452 = vmatprep.subr.bf16.mxu0 0
          %453 = vmatpush1.bf16.msra.mxu0 0
          %454 = vmatprep.subr.bf16.mxu0 0
          %455 = vmatpush1.bf16.msra.mxu0 0
          %456 = vmatprep.subr.bf16.mxu0 0
          %457 = vmatpush1.bf16.msra.mxu0 0
          %458 = vmatprep.mubr.bf16.mxu0 0
          %459 = vmatmul.mubr.bf16.gmra.mrb[0].mxu0 %v374
          %v460 = vpop.f32.mrb[0].mxu0
          %v461 = vadd.f32 0.0, %v460
          %v462 = vpop.f32.mrb[0].mxu0
          %v463 = vpop.f32.mrb[0].mxu0
          %v464 = vadd.f32 0.0, %v463
          %v465 = vpop.f32.mrb[0].mxu0
          %466 = vmatprep.mubr.bf16.mxu0 0
          %467 = vmatmul.mubr.bf16.gmra.mrb[0].mxu0 %v375
          %v468 = vpop.f32.mrb[0].mxu0
          %v469 = vadd.f32 0.0, %v468
          %v470 = vpop.f32.mrb[0].mxu0
          %v471 = vpop.f32.mrb[0].mxu0
          %v472 = vadd.f32 0.0, %v471
          %v473 = vpop.f32.mrb[0].mxu0
          %474 = vdwg.mxu0
          %v475 = vmul.f32 %v461, %v461
          %v476 = vmul.f32 %v464, %v464
          %v477 = vmul.f32 %v469, %v469
          %v478 = vmul.f32 %v472, %v472
          %479 = vadd.xlane.f32.xlu0 %v475
          %v480 = vpop.xlane.xlu0 %479
          %481 = vadd.xlane.f32.xlu0 %v476
          %v482 = vpop.xlane.xlu0 %481
          %483 = vadd.xlane.f32.xlu0 %v477
          %v484 = vpop.xlane.xlu0 %483
          %485 = vadd.xlane.f32.xlu0 %v478
          %v486 = vpop.xlane.xlu0 %485
          %v487 = vadd.f32 %v480, 1e-12
          %v488 = vadd.f32 %v482, 1e-12
          %v489 = vadd.f32 %v484, 1e-12
          %v490 = vadd.f32 %v486, 1e-12
          %v491 = vrsqrt.pop %v487
          %v492 = vrsqrt.pop %v488
          %v493 = vrsqrt.pop %v489
          %v494 = vrsqrt.pop %v490
          %v495 = vmul.f32 %v461, %v491
          %v496 = vmul.f32 %v464, %v492
          %v497 = vmul.f32 %v469, %v493
          %v498 = vmul.f32 %v472, %v494
          %499 = vst [vmem:[#allocation15] sm:$0xff] %v495
          %500 = vst [vmem:[#allocation15 + $0x8] sm:$0xff] %v496
          %501 = vst [vmem:[#allocation15 + $0x10] sm:$0xff] %v497
          %502 = vst [vmem:[#allocation15 + $0x18] sm:$0xff] %v498
          %v503 = vpack.c.bf16 %v496, %v495
          %v504 = vpack.c.bf16 %v498, %v497
          %505 = vst [vmem:[#allocation2] sm:$0xff] %v503
          %506 = vst [vmem:[#allocation2 + $0x8] sm:$0xff] %v504
          %vm507 = vcmask 253952
          %508 = vst.msk [vmem:[#allocation3] sm:$0x1] %vm507, 0.0
          %vm509 = vcmask 7168
          %510 = vst.msk [vmem:[#allocation4] sm:$0xff] %vm509, 0.0
          %511 = vst.msk [vmem:[#allocation4 + $0x8] sm:$0xff] %vm509, 0.0
        $region60: #{tpu_custom_call.1} parent=39 // pred_fallthru
          _
        %v512 = vld [vmem:[%s295] sm:$0xf]
        %v513 = vld [vmem:[%s295 + $0x4] sm:$0xf]
        %v514 = vld [vmem:[#allocation11] sm:$0xf]
        %v515 = vld [vmem:[#allocation11 + $0x4] sm:$0xf]
        %v516 = vld [vmem:[#allocation11 + $0x8] sm:$0xf]
        %v517 = vld [vmem:[#allocation11 + $0xc] sm:$0xf]
        %v518 = vld [vmem:[#allocation11 + $0x10] sm:$0xf]
        %v519 = vld [vmem:[#allocation11 + $0x14] sm:$0xf]
        %v520 = vld [vmem:[#allocation11 + $0x18] sm:$0xf]
        %v521 = vld [vmem:[#allocation11 + $0x1c] sm:$0xf]
        %v522 = vld [vmem:[#allocation11 + $0x20] sm:$0xf]
        %v523 = vld [vmem:[#allocation11 + $0x24] sm:$0xf]
        %v524 = vld [vmem:[#allocation11 + $0x28] sm:$0xf]
        %v525 = vld [vmem:[#allocation11 + $0x2c] sm:$0xf]
        %v526 = vld [vmem:[#allocation11 + $0x30] sm:$0xf]
        %v527 = vld [vmem:[#allocation11 + $0x34] sm:$0xf]
        %v528 = vld [vmem:[#allocation11 + $0x38] sm:$0xf]
        %v529 = vld [vmem:[#allocation11 + $0x3c] sm:$0xf]
        %v532 = vunpack.c.l.b16 %v512
        %v533 = vunpack.c.l.b16 %v513
        %v534 = vpack.c.b16 %v533, %v532
        %v552 = vunpack.c.l.b16 %v514
        %v553 = vunpack.c.l.b16 %v515
        %v554 = vunpack.c.l.b16 %v516
        %v555 = vunpack.c.l.b16 %v517
        %v556 = vunpack.c.l.b16 %v518
        %v557 = vunpack.c.l.b16 %v519
        %v558 = vunpack.c.l.b16 %v520
        %v559 = vunpack.c.l.b16 %v521
        %v560 = vunpack.c.l.b16 %v522
        %v561 = vunpack.c.l.b16 %v523
        %v562 = vunpack.c.l.b16 %v524
        %v563 = vunpack.c.l.b16 %v525
        %v564 = vunpack.c.l.b16 %v526
        %v565 = vunpack.c.l.b16 %v527
        %v566 = vunpack.c.l.b16 %v528
        %v567 = vunpack.c.l.b16 %v529
        %v568 = vpack.c.b16 %v553, %v552
        %v569 = vpack.c.b16 %v555, %v554
        %v570 = vpack.c.b16 %v557, %v556
        %v571 = vpack.c.b16 %v559, %v558
        %v572 = vpack.c.b16 %v561, %v560
        %v573 = vpack.c.b16 %v563, %v562
        %v574 = vpack.c.b16 %v565, %v564
        %v575 = vpack.c.b16 %v567, %v566
        %584 = vmatprep.subr.bf16.mxu0 0
        %585 = vmatpush1.bf16.msra.mxu0 %v568
        %586 = vmatprep.subr.bf16.mxu0 0
        %587 = vmatpush1.bf16.msra.mxu0 %v569
        %588 = vmatprep.subr.bf16.mxu0 0
        %589 = vmatpush1.bf16.msra.mxu0 %v570
        %590 = vmatprep.subr.bf16.mxu0 0
        %591 = vmatpush1.bf16.msra.mxu0 %v571
        %592 = vmatprep.subr.bf16.mxu0 0
        %593 = vmatpush1.bf16.msra.mxu0 %v572
        %594 = vmatprep.subr.bf16.mxu0 0
        %595 = vmatpush1.bf16.msra.mxu0 %v573
        %596 = vmatprep.subr.bf16.mxu0 0
        %597 = vmatpush1.bf16.msra.mxu0 %v574
        %598 = vmatprep.subr.bf16.mxu0 0
        %599 = vmatpush1.bf16.msra.mxu0 %v575
        %600 = vmatprep.subr.bf16.mxu0 0
        %601 = vmatpush1.bf16.msra.mxu0 0
        %602 = vmatprep.subr.bf16.mxu0 0
        %603 = vmatpush1.bf16.msra.mxu0 0
        %604 = vmatprep.subr.bf16.mxu0 0
        %605 = vmatpush1.bf16.msra.mxu0 0
        %606 = vmatprep.subr.bf16.mxu0 0
        %607 = vmatpush1.bf16.msra.mxu0 0
        %608 = vmatprep.subr.bf16.mxu0 0
        %609 = vmatpush1.bf16.msra.mxu0 0
        %610 = vmatprep.subr.bf16.mxu0 0
        %611 = vmatpush1.bf16.msra.mxu0 0
        %612 = vmatprep.subr.bf16.mxu0 0
        %613 = vmatpush1.bf16.msra.mxu0 0
        %614 = vmatprep.subr.bf16.mxu0 0
        %615 = vmatpush1.bf16.msra.mxu0 0
        %616 = vmatprep.mubr.bf16.mxu0 0
        %617 = vmatmul.mubr.bf16.gmra.mrb[0].mxu0 %v534
        %v618 = vpop.f32.mrb[0].mxu0
        %v619 = vadd.f32 0.0, %v618
        %v620 = vpop.f32.mrb[0].mxu0
        %v621 = vpop.f32.mrb[0].mxu0
        %v622 = vadd.f32 0.0, %v621
        %v623 = vpop.f32.mrb[0].mxu0
        %624 = vdwg.mxu0
        %v625 = vmul.f32 %v619, %v619
        %v626 = vmul.f32 %v622, %v622
        %627 = vadd.xlane.f32.xlu0 %v625
        %v628 = vpop.xlane.xlu0 %627
        %629 = vadd.xlane.f32.xlu0 %v626
        %v630 = vpop.xlane.xlu0 %629
        %v631 = vadd.f32 %v628, 1e-12
        %v632 = vadd.f32 %v630, 1e-12
        %v633 = vrsqrt.pop %v631
        %v634 = vrsqrt.pop %v632
        %v635 = vmul.f32 %v619, %v633
        %v636 = vmul.f32 %v622, %v634
        %637 = vst [vmem:[%s333] sm:$0xff] %v635
        %638 = vst [vmem:[%s333 + $0x8] sm:$0xff] %v636
        %v639 = vpack.c.bf16 %v636, %v635
        %v640 = vld [vmem:[#allocation2] sm:$0xff]
        %v641 = vld [vmem:[#allocation2 + $0x8] sm:$0xff]
        %642 = vmatprep.subr.bf16.mxu0 0
        %643 = vmatpush1.bf16.xpose.msra.mxu0 %v640
        %644 = vmatprep.subr.bf16.mxu0 0
        %645 = vmatpush1.bf16.xpose.msra.mxu0 %v641
        %646 = vmatprep.subr.bf16.mxu0 0
        %647 = vmatpush1.bf16.xpose.msra.mxu0 0
        %648 = vmatprep.subr.bf16.mxu0 0
        %649 = vmatpush1.bf16.xpose.msra.mxu0 0
        %650 = vmatprep.subr.bf16.mxu0 0
        %651 = vmatpush1.bf16.xpose.msra.mxu0 0
        %652 = vmatprep.subr.bf16.mxu0 0
        %653 = vmatpush1.bf16.xpose.msra.mxu0 0
        %654 = vmatprep.subr.bf16.mxu0 0
        %655 = vmatpush1.bf16.xpose.msra.mxu0 0
        %656 = vmatprep.subr.bf16.mxu0 0
        %657 = vmatpush1.bf16.xpose.msra.mxu0 0
        %658 = vmatprep.subr.bf16.mxu0 0
        %659 = vmatpush1.bf16.xpose.msra.mxu0 0
        %660 = vmatprep.subr.bf16.mxu0 0
        %661 = vmatpush1.bf16.xpose.msra.mxu0 0
        %662 = vmatprep.subr.bf16.mxu0 0
        %663 = vmatpush1.bf16.xpose.msra.mxu0 0
        %664 = vmatprep.subr.bf16.mxu0 0
        %665 = vmatpush1.bf16.xpose.msra.mxu0 0
        %666 = vmatprep.subr.bf16.mxu0 0
        %667 = vmatpush1.bf16.xpose.msra.mxu0 0
        %668 = vmatprep.subr.bf16.mxu0 0
        %669 = vmatpush1.bf16.xpose.msra.mxu0 0
        %670 = vmatprep.subr.bf16.mxu0 0
        %671 = vmatpush1.bf16.xpose.msra.mxu0 0
        %672 = vmatprep.subr.bf16.mxu0 0
        %673 = vmatpush1.bf16.xpose.msra.mxu0 0
        %674 = vmatprep.mubr.bf16.mxu0 0
        %675 = vmatmul.mubr.bf16.gmra.mrb[0].mxu0 %v639
        %v676 = vpop.f32.mrb[0].mxu0
        %v677 = vadd.f32 0.0, %v676
        %v678 = vpop.f32.mrb[0].mxu0
        %v679 = vpop.f32.mrb[0].mxu0
        %v680 = vadd.f32 0.0, %v679
        %v681 = vpop.f32.mrb[0].mxu0
        %682 = vdwg.mxu0
        %v683 = vsub.f32 %v677, 1.0
        %v684 = vsub.f32 %v680, 1.0
        %v685 = vstv %s341
        %v686 = vmul.f32 %v685, %v683
        %v687 = vmul.f32 %v685, %v684
        %v688 = vmul.f32 %v686, 1.442695
        %v689 = vpow.pop %v688
        %v690 = vmul.f32 %v687, 1.442695
        %v691 = vpow.pop %v690
        %vm692 = vcmask 261120
        %v693 = vsel %vm692, %v689, 0.0
        %694 = vadd.xlane.f32.xlu0 %v693
        %v695 = vpop.xlane.xlu0 %694
        %v696 = vsel %vm692, %v691, 0.0
        %697 = vadd.xlane.f32.xlu0 %v696
        %v698 = vpop.xlane.xlu0 %697
        %v699 = vlog2.pop %v695
        %v700 = vmul.f32 %v699, 0.6931472
        %v701 = vlog2.pop %v698
        %v702 = vmul.f32 %v701, 0.6931472
        %v703 = vadd.f32 %v685, %v700
        %v704 = vadd.f32 %v685, %v702
        %v705 = vld [vmem:[#allocation3] sm:$0x1]
        %v706 = vadd.f32 %v693, %v696
        %v707 = vrot.slane %v706, 4
        %v708 = vadd.f32 %v706, %v707
        %v709 = vrot.slane %v708, 2
        %v710 = vadd.f32 %v708, %v709
        %v711 = vrot.slane %v710, 1
        %v712 = vadd.f32 %v710, %v711
        %v713 = vadd.f32 %v705, %v712
        %vm714 = vcmask 253952
        %715 = vst.msk [vmem:[#allocation3] sm:$0x1] %vm714, %v713
        %s716 = smul.u32 %s29, 16
        %s717 = sshra.s32 %s716, 4
        %s718 = sand.u32 %s716, 15
        %s719 = smul.addr %s717, 8
        %s720 = scalar_lea.vmem [#allocation2], %s719
        %v721 = vld [vmem:[%s720] sm:$0xff]
        %v722 = vunpack.c.l.bf16 %v639
        %v723 = vunpack.c.h.bf16 %v639
        %v724 = vunpack.c.l.bf16 %v721
        %v725 = vunpack.c.h.bf16 %v721
        %v726 = vmul.f32 %v722, %v724
        %v727 = vmul.f32 %v723, %v725
        %728 = vadd.xlane.f32.xlu0 %v726
        %v729 = vpop.xlane.xlu0 %728
        %730 = vadd.xlane.f32.xlu0 %v727
        %v731 = vpop.xlane.xlu0 %730
        %v732 = vmul.f32 %v685, %v729
        %v733 = vmul.f32 %v685, %v731
        %v734 = vld [vmem:[#allocation4] sm:$0xff]
        %v735 = vld [vmem:[#allocation4 + $0x8] sm:$0xff]
        %v736 = vmul.f32 %v732, 2.0
        %v737 = vmul.f32 %v733, 2.0
        %v738 = vsub.f32 %v703, %v736
        %v739 = vsub.f32 %v704, %v737
        %v740 = vadd.f32 %v734, %v738
        %v741 = vadd.f32 %v735, %v739
        %vm742 = vcmask 7168
        %743 = vst.msk [vmem:[#allocation4] sm:$0xff] %vm742, %v740
        %744 = vst.msk [vmem:[#allocation4 + $0x8] sm:$0xff] %vm742, %v741
        %p745 = scmp.eq.s32.totalorder %s29, 1
        // Predicated region
        $region61: #{tpu_custom_call.1} parent=39 // pred_check
          %p746 = pneg %p745
        $region62: #{tpu_custom_call.1} parent=39 // pred_check_branch
          %748 = sbr.rel (%p746) target = $region64
        $region63: #{tpu_custom_call.1} parent=39 // pred_region
          %v749 = vld [vmem:[#allocation3] sm:$0x1]
          %v750 = vlog2.pop %v749
          %v751 = vmul.f32 %v750, 0.6931472
          %v752 = vadd.f32 %v685, %v751
          %v753 = vld [vmem:[#allocation4] sm:$0xff]
          %v754 = vld [vmem:[#allocation4 + $0x8] sm:$0xff]
          %v755 = vsel %vm742, %v753, 0.0
          %v756 = vsel %vm742, %v754, 0.0
          %v757 = vadd.f32 %v755, %v756
          %758 = vadd.xlane.f32.xlu0 %v757
          %v759 = vpop.xlane.xlu0 %758
          %v760 = vrot.slane %v759, 4
          %v761 = vadd.f32 %v759, %v760
          %v762 = vrot.slane %v761, 2
          %v763 = vadd.f32 %v761, %v762
          %v764 = vrot.slane %v763, 1
          %v765 = vadd.f32 %v763, %v764
          %s766 = vtos %v765
          %v767 = vstv %s766
          %v768 = vsel %vm714, %v752, 0.0
          %769 = vadd.xlane.f32.xlu0 %v768
          %v770 = vpop.xlane.xlu0 %769
          %v771 = vrot.slane %v770, 4
          %v772 = vadd.f32 %v770, %v771
          %v773 = vrot.slane %v772, 2
          %v774 = vadd.f32 %v772, %v773
          %v775 = vrot.slane %v774, 1
          %v776 = vadd.f32 %v774, %v775
          %s777 = vtos %v776
          %v778 = vstv %s777
          %v779 = vadd.f32 %v767, %v778
          %v780 = vmul.f32 %v779, 0.015625
          %vm781 = vcmask 0
          %782 = vst.msk [vmem:[#allocation17] sm:$0x1] %vm781, %v780
        $region64: #{tpu_custom_call.1} parent=39 // pred_fallthru
          _
        %s783 = sand.u32 %s147, 1
        %s784 = scalar_lea.sflag [#allocation8], %s783
        %s785 = sand.u32 %s147, 1
        %s786 = smul.addr %s785, 16
        %s787 = scalar_lea.vmem [#allocation14], %s786
        // Predicated region
        $region65: #{tpu_custom_call.1} parent=39 // pred_check
          %p788 = pneg %p157
        $region66: #{tpu_custom_call.1} parent=39 // pred_check_branch
          %790 = sbr.rel (%p788) target = $region68
        $region67: #{tpu_custom_call.1} parent=39 // pred_region
          %s791 = smul.u32 2, %s29
          %s793 = ssub.s32 256, 256
          %794 = vsyncadd %s784, %s793
          %s795 = smul.addr %s791, 128
          %s796 = scalar_lea.hbm %s5, %s795
          %s797 = sshll.u32 %s787, 4
          %s798 = int_to_ptr.vmem [resolvable:$true] %s797
          %803 = dma.vmem_to_hbm [thread:$0]  %s798, 256, %s796, %s784, 128, 128, 8
        $region68: #{tpu_custom_call.1} parent=39 // pred_fallthru
          _
        // Predicated region
        $region69: #{tpu_custom_call.1} parent=39 // pred_check
          %p804 = pneg %p178
        $region70: #{tpu_custom_call.1} parent=39 // pred_check_branch
          %806 = sbr.rel (%p804) target = $region72
        $region71: #{tpu_custom_call.1} parent=39 // pred_region
          %s808 = ssub.s32 512, 512
          %809 = vsyncadd [#allocation16], %s808
          %s810 = sshll.u32 [#allocation15], 4
          %s811 = int_to_ptr.vmem [resolvable:$true] %s810
          %816 = dma.vmem_to_hbm [thread:$0]  %s811, 512, %s6, [#allocation16], 128, 128, 8
        $region72: #{tpu_custom_call.1} parent=39 // pred_fallthru
          _
        // Predicated region
        $region73: #{tpu_custom_call.1} parent=39 // pred_check
          %p817 = pneg %p199
        $region74: #{tpu_custom_call.1} parent=39 // pred_check_branch
          %819 = sbr.rel (%p817) target = $region76
        $region75: #{tpu_custom_call.1} parent=39 // pred_region
          %s821 = ssub.s32 16, 16
          %822 = vsyncadd [#allocation16], %s821
          %s824 = sshll.u32 [#allocation17], 4
          %s825 = int_to_ptr.vmem [resolvable:$true] %s824
          %827 = dma.vmem_to_hbm [thread:$0]  %s825, 16, %s7, [#allocation16]
        $region76: #{tpu_custom_call.1} parent=39 // pred_fallthru
          _
        // Predicated region
        $region77: #{tpu_custom_call.1} parent=39 // pred_check
          %p828 = pneg %p178
        $region78: #{tpu_custom_call.1} parent=39 // pred_check_branch
          %830 = sbr.rel (%p828) target = $region80
        $region79: #{tpu_custom_call.1} parent=39 // pred_region
          %831 = dma.done [#allocation16], 512
        $region80: #{tpu_custom_call.1} parent=39 // pred_fallthru
          _
        // Predicated region
        $region81: #{tpu_custom_call.1} parent=39 // pred_check
          %p832 = pneg %p199
        $region82: #{tpu_custom_call.1} parent=39 // pred_check_branch
          %834 = sbr.rel (%p832) target = $region84
        $region83: #{tpu_custom_call.1} parent=39 // pred_region
          %835 = dma.done [#allocation16], 16
        $region84: #{tpu_custom_call.1} parent=39 // pred_fallthru
          _
      $region40: #{tpu_custom_call.1} parent=5 // pred_fallthru
        _
      %p836 = scmp.le.s32.totalorder 2, %s24
      // Predicated region
      $region85: #{tpu_custom_call.1} parent=5 // pred_check
        %p837 = pneg %p836
      $region86: #{tpu_custom_call.1} parent=5 // pred_check_branch
        %839 = sbr.rel (%p837) target = $region88
      $region87: #{tpu_custom_call.1} parent=5 // pred_region
        %s840 = ssub.s32 %s24, 2
        // Predicated region
        $region89: #{tpu_custom_call.1} parent=87 // pred_check
          %p841 = pneg %p163
        $region90: #{tpu_custom_call.1} parent=87 // pred_check_branch
          %843 = sbr.rel (%p841) target = $region92
        $region91: #{tpu_custom_call.1} parent=87 // pred_region
          %s844 = sand.u32 %s148, 1
          %s845 = scalar_lea.sflag [#allocation8], %s844
          %s846 = sand.u32 %s148, 1
          %s847 = smul.addr %s846, 16
          %s848 = scalar_lea.vmem [#allocation14], %s847
          %849 = dma.done %s845, 256
        $region92: #{tpu_custom_call.1} parent=87 // pred_fallthru
          _
      $region88: #{tpu_custom_call.1} parent=5 // pred_fallthru
        _
    $region6: #{tpu_custom_call.1} parent=1 // loop_footer
      %s28 = sadd.s32 1, %s24
    $region7: #{tpu_custom_call.1} parent=1 // loop_footer_branch
      %23 = sbr.rel target = $region3
    $region8: #{tpu_custom_call.1} parent=1 // loop_exit
      _
    %850 = vsyncpa [#allocation7], 1
    %s851 = scalar_lea.sflag [#allocation7], 1
    %852 = vsyncpa %s851, 1
    %853 = vsyncpa [#allocation10], 1
    %854 = vsyncpa [#allocation13], 1
    %855 = vsyncpa [#allocation8], 1
    %s856 = scalar_lea.sflag [#allocation8], 1
    %857 = vsyncpa %s856, 1
    %858 = vsyncpa [#allocation16], 1

</llo_original>
